<compile_context>
chip_gen: v5e
topology: v5e:2x2
jax: 0.10.0
libtpu: 0.0.40
codegen_flags: <defaults>
</compile_context>

<pallas_src>
import functools

import jax
import jax.numpy as jnp
from jax.experimental import pallas as pl
from jax.experimental.pallas import tpu as pltpu


def _round_up(x, m):
    return ((x + m - 1) // m) * m


def _choose_tiles(n):
    """Pick (tile_m, tile_k, n_pad) for the aggregate.

    Large tiles for the HBM-bound A_hat stream (512 x up-to-2048 on big
    graphs); everything is a multiple of 128 so v5e/v6e/v7x layouts are all
    happy. Small graphs collapse to a single tile.
    """
    if n <= 512:
        t = _round_up(n, 128)
        return t, t, t
    if n <= 2048:
        n_pad = _round_up(n, 512)
        return 512, n_pad, n_pad
    n_pad = _round_up(n, 2048)
    return 512, 2048, n_pad


# ---------------------------------------------------------------------------
# Kernel 1: feature projection  XW = X @ W    (W already [F_in, F_out])
# ---------------------------------------------------------------------------
def _project_kernel(x_ref, w_ref, o_ref):
    o_ref[...] = jnp.dot(
        x_ref[...], w_ref[...], preferred_element_type=jnp.float32
    ).astype(o_ref.dtype)


def project(x, w, *, tile_m):
    n, f_in = x.shape
    f_out = w.shape[1]
    return pl.pallas_call(
        _project_kernel,
        out_shape=jax.ShapeDtypeStruct((n, f_out), jnp.bfloat16),
        grid=(n // tile_m,),
        in_specs=[
            pl.BlockSpec((tile_m, f_in), lambda i: (i, 0)),
            pl.BlockSpec((f_in, f_out), lambda i: (0, 0)),
        ],
        out_specs=pl.BlockSpec((tile_m, f_out), lambda i: (i, 0)),
        compiler_params=pltpu.CompilerParams(
            dimension_semantics=("parallel",)),
    )(x, w)


# ---------------------------------------------------------------------------
# Kernel 2: tiled aggregation  out = A_hat @ XW + b  (+ optional ReLU)
#   grid = (row tiles, K tiles); K (reduction over A_hat columns) is last and
#   "arbitrary". Two variants:
#     * bf16 output (layer 1): f32 VMEM scratch accumulator, finalize -> bf16.
#     * f32 output (layer 2): accumulate directly into the resident o_ref.
#   XW is either VMEM-resident (constant index_map, sliced in-kernel) or
#   streamed per K tile.
# ---------------------------------------------------------------------------
def _agg_kernel_scratch(a_ref, xw_ref, b_ref, o_ref, acc_ref, *,
                        relu, tile_k, resident_xw):
    k = pl.program_id(1)

    @pl.when(k == 0)
    def _():
        acc_ref[...] = jnp.zeros_like(acc_ref)

    if resident_xw:
        start = pl.multiple_of(k * tile_k, tile_k)
        xw = xw_ref[pl.ds(start, tile_k), :]
    else:
        xw = xw_ref[...]
    acc_ref[...] += jnp.dot(a_ref[...], xw, preferred_element_type=jnp.float32)

    @pl.when(k == pl.num_programs(1) - 1)
    def _():
        out = acc_ref[...] + b_ref[...]
        if relu:
            out = jnp.maximum(out, 0.0)
        o_ref[...] = out.astype(o_ref.dtype)


def _agg_kernel_direct(a_ref, xw_ref, b_ref, o_ref, *,
                       relu, tile_k, resident_xw):
    k = pl.program_id(1)

    @pl.when(k == 0)
    def _():
        o_ref[...] = jnp.zeros_like(o_ref)

    if resident_xw:
        start = pl.multiple_of(k * tile_k, tile_k)
        xw = xw_ref[pl.ds(start, tile_k), :]
    else:
        xw = xw_ref[...]
    o_ref[...] += jnp.dot(a_ref[...], xw, preferred_element_type=jnp.float32)

    @pl.when(k == pl.num_programs(1) - 1)
    def _():
        out = o_ref[...] + b_ref[...]
        if relu:
            out = jnp.maximum(out, 0.0)
        o_ref[...] = out


_RESIDENT_XW_BYTES = 24 << 20   # keep resident XW comfortably inside v7x VMEM


def aggregate(a_hat, xw, b, *, relu, out_dtype, tile_m, tile_k):
    n = a_hat.shape[0]
    f_out = xw.shape[1]
    b2d = b.reshape(1, f_out).astype(jnp.float32)

    xw_bytes = n * f_out * jnp.dtype(xw.dtype).itemsize
    resident_xw = xw_bytes <= _RESIDENT_XW_BYTES
    if resident_xw:
        # DMA'd once for the whole call; sliced per K step inside the kernel.
        xw_spec = pl.BlockSpec((n, f_out), lambda i, k: (0, 0))
    else:
        xw_spec = pl.BlockSpec((tile_k, f_out), lambda i, k: (k, 0))

    use_scratch = jnp.dtype(out_dtype) != jnp.dtype(jnp.float32)
    kern = functools.partial(
        _agg_kernel_scratch if use_scratch else _agg_kernel_direct,
        relu=relu, tile_k=tile_k, resident_xw=resident_xw)
    scratch = ([pltpu.VMEM((tile_m, f_out), jnp.float32)]
               if use_scratch else [])

    out_itemsize = jnp.dtype(out_dtype).itemsize
    vmem_need = (2 * tile_m * tile_k * 2                                  # A (dbl-buffered)
                 + (xw_bytes if resident_xw else 2 * tile_k * f_out * 2)  # XW
                 + 2 * tile_m * f_out * out_itemsize                      # out block
                 + (tile_m * f_out * 4 if use_scratch else 0)             # acc scratch
                 + 2 * f_out * 4)                                         # bias
    vmem_limit = int(min(max(vmem_need + (8 << 20), 32 << 20), 48 << 20))

    return pl.pallas_call(
        kern,
        out_shape=jax.ShapeDtypeStruct((n, f_out), out_dtype),
        grid=(n // tile_m, n // tile_k),
        in_specs=[
            pl.BlockSpec((tile_m, tile_k), lambda i, k: (i, k)),
            xw_spec,
            pl.BlockSpec((1, f_out), lambda i, k: (0, 0)),
        ],
        out_specs=pl.BlockSpec((tile_m, f_out), lambda i, k: (i, 0)),
        scratch_shapes=scratch,
        compiler_params=pltpu.CompilerParams(
            dimension_semantics=("parallel", "arbitrary"),
            vmem_limit_bytes=vmem_limit),
    )(a_hat, xw, b2d)


def gcn_layer(a_hat, x, w_t, b, *, relu, out_dtype, tile_m, tile_k):
    """One GCNConv: A_hat @ (X @ W) + b, optionally ReLU'd."""
    xw = project(x, w_t, tile_m=tile_m)        # [N_pad, F_out_pad] bf16
    return aggregate(a_hat, xw, b, relu=relu, out_dtype=out_dtype,
                     tile_m=tile_m, tile_k=tile_k)


# ---------------------------------------------------------------------------
# Plain-JAX glue: normalized dense adjacency + parameter setup / padding.
# Everything here is static per graph/model and is hoisted OUT of the
# jitted forward path.
# ---------------------------------------------------------------------------
def gcn_norm_dense(edge_index, num_nodes):
    """Dense A_hat = D^-1/2 (A + I) D^-1/2 matching PyG gcn_norm defaults.

    Matches add_remaining_self_loops semantics: existing self-loops are
    dropped and every node gets exactly one unit-weight self-loop. Degrees
    are summed over the target (col) index, as PyG's gcn_norm does.
    """
    src = edge_index[0]
    dst = edge_index[1]
    not_loop = (src != dst).astype(jnp.float32)
    a = jnp.zeros((num_nodes, num_nodes), jnp.float32).at[dst, src].add(not_loop)
    a = a + jnp.eye(num_nodes, dtype=jnp.float32)
    deg = a.sum(axis=1)
    dinv = jnp.where(deg > 0, 1.0 / jnp.sqrt(deg), 0.0)
    return dinv[:, None] * a * dinv[None, :]


def build_a_hat(edge_index, num_nodes):
    """Padded bf16 A_hat — build once per graph and reuse across forwards."""
    _, _, n_pad = _choose_tiles(num_nodes)
    a_hat = gcn_norm_dense(edge_index, num_nodes)
    a_hat = jnp.pad(a_hat, ((0, n_pad - num_nodes), (0, n_pad - num_nodes)))
    return a_hat.astype(jnp.bfloat16)


def init_gcn_params(key, in_channels, hidden, out_channels):
    k1, k2 = jax.random.split(key)

    def glorot(k, f_out, f_in):
        lim = jnp.sqrt(6.0 / (f_in + f_out))
        return jax.random.uniform(k, (f_out, f_in), jnp.float32, -lim, lim)

    return {
        "w1": glorot(k1, hidden, in_channels),        # PyTorch-style [out, in]
        "b1": jnp.zeros((hidden,), jnp.float32),
        "w2": glorot(k2, out_channels, hidden),
        "b2": jnp.zeros((out_channels,), jnp.float32),
    }


def prepare_params(params):
    """Pre-transpose + zero-pad weights/biases once (hoisted out of forward)."""
    hidden, in_ch = params["w1"].shape
    out_ch = params["w2"].shape[0]
    in_pad = _round_up(in_ch, 128)
    hid_pad = _round_up(hidden, 128)
    out_pad = _round_up(out_ch, 128)
    w1 = jnp.pad(params["w1"].T, ((0, in_pad - in_ch), (0, hid_pad - hidden)))
    w2 = jnp.pad(params["w2"].T, ((0, hid_pad - hidden), (0, out_pad - out_ch)))
    return {
        "w1": w1.astype(jnp.bfloat16),
        "b1": jnp.pad(params["b1"], (0, hid_pad - hidden)).astype(jnp.float32),
        "w2": w2.astype(jnp.bfloat16),
        "b2": jnp.pad(params["b2"], (0, out_pad - out_ch)).astype(jnp.float32),
    }


@functools.partial(jax.jit, static_argnames=("num_nodes", "out_channels"))
def gcn_forward(prepped, x, a_hat, *, num_nodes, out_channels):
    n, in_ch = x.shape
    tile_m, tile_k, n_pad = _choose_tiles(num_nodes)
    in_pad = prepped["w1"].shape[0]

    xp = jnp.pad(x, ((0, n_pad - n), (0, in_pad - in_ch))).astype(jnp.bfloat16)

    # Layer 1: bf16 emitted directly from the aggregate (ReLU + bias fused),
    # feeding layer 2's projection with no extra cast pass.
    h = gcn_layer(a_hat, xp, prepped["w1"], prepped["b1"],
                  relu=True, out_dtype=jnp.bfloat16,
                  tile_m=tile_m, tile_k=tile_k)
    # Layer 2: f32 output, accumulated directly in the resident output block.
    out = gcn_layer(a_hat, h, prepped["w2"], prepped["b2"],
                    relu=False, out_dtype=jnp.float32,
                    tile_m=tile_m, tile_k=tile_k)
    return out[:num_nodes, :out_channels]


if __name__ == "__main__":
    key = jax.random.PRNGKey(0)
    k_x, k_p = jax.random.split(key)

    N = 16            # nodes
    IN_CH = 8         # in_channels
    HIDDEN = 128      # GCNConv(in, 128)
    OUT_CH = 8        # out_channels

    # node features [N, in_channels]
    x = jax.random.normal(k_x, (N, IN_CH), jnp.float32)

    # simple bidirectional ring graph -> edge_index [2, 2N]
    idx = jnp.arange(N, dtype=jnp.int32)
    src = jnp.concatenate([idx, (idx + 1) % N])
    dst = jnp.concatenate([(idx + 1) % N, idx])
    edge_index = jnp.stack([src, dst], axis=0)

    params = init_gcn_params(k_p, IN_CH, HIDDEN, OUT_CH)

    # Static per-graph / per-model preprocessing, done once and reused.
    a_hat = build_a_hat(edge_index, N)
    prepped = prepare_params(params)

    out = gcn_forward(prepped, x, a_hat, num_nodes=N, out_channels=OUT_CH)
    jax.block_until_ready(out)
    assert out.shape == (N, OUT_CH)
    print("KERNEL_OK")
</pallas_src>

<mosaic_0001>
module attributes {stable_mosaic.version = 11 : i64} {
  func.func @_project_kernel(%arg0: i32, %arg1: memref<128x128xbf16, #tpu.memory_space<vmem>>, %arg2: memref<128x128xbf16, #tpu.memory_space<vmem>>, %arg3: memref<128x128xbf16, #tpu.memory_space<vmem>>) attributes {dimension_semantics = [#tpu.dimension_semantics<parallel>], iteration_bounds = array<i64: 1>, scalar_prefetch = 0 : i64, scratch_operands = 0 : i64, tpu.core_type = #tpu.core_type<tc>, window_params = [{transform_indices = @transform_0, window_bounds = array<i64: 128, 128>}, {pipeline_mode = #tpu.pipeline_mode<synchronous>, transform_indices = @transform_1, window_bounds = array<i64: 128, 128>}, {transform_indices = @transform_2, window_bounds = array<i64: 128, 128>}]} {
    %c0 = arith.constant 0 : index
    %c0_0 = arith.constant 0 : index
    %0 = vector.load %arg1[%c0, %c0_0] : memref<128x128xbf16, #tpu.memory_space<vmem>>, vector<128x128xbf16>
    %c0_1 = arith.constant 0 : index
    %c0_2 = arith.constant 0 : index
    %1 = vector.load %arg2[%c0_1, %c0_2] : memref<128x128xbf16, #tpu.memory_space<vmem>>, vector<128x128xbf16>
    %cst = arith.constant dense<0.000000e+00> : vector<128x128xf32>
    %2 = tpu.matmul %0, %1, %cst {dimension_numbers = #tpu.dot_dimension_numbers<[1], [0], [0], [1], [0, 0, 1, 1], [], []>} : vector<128x128xbf16>, vector<128x128xbf16>, vector<128x128xf32> -> vector<128x128xf32>
    %3 = arith.truncf %2 : vector<128x128xf32> to vector<128x128xbf16>
    %c0_3 = arith.constant 0 : index
    %c0_4 = arith.constant 0 : index
    %4 = vector.load %arg3[%c0_3, %c0_4] : memref<128x128xbf16, #tpu.memory_space<vmem>>, vector<128x128xbf16>
    tpu.vector_store %arg3[%c0_3, %c0_4], %3 {strides = array<i32>} : memref<128x128xbf16, #tpu.memory_space<vmem>>, vector<128x128xbf16>,
    return
  }
  func.func @transform_0(%arg0: i32) -> (i32, i32) {
    %c0_i32 = arith.constant 0 : i32
    %c0_i32_0 = arith.constant 0 : i32
    return %arg0, %c0_i32 : i32, i32
  }
  func.func @transform_1(%arg0: i32) -> (i32, i32) {
    %c0_i32 = arith.constant 0 : i32
    %c0_i32_0 = arith.constant 0 : i32
    %c0_i32_1 = arith.constant 0 : i32
    return %c0_i32, %c0_i32_0 : i32, i32
  }
  func.func @transform_2(%arg0: i32) -> (i32, i32) {
    %c0_i32 = arith.constant 0 : i32
    %c0_i32_0 = arith.constant 0 : i32
    return %arg0, %c0_i32 : i32, i32
  }
}

module attributes {stable_mosaic.version = 11 : i64} {
  func.func @_agg_kernel_direct(%arg0: i32, %arg1: i32, %arg2: memref<128x128xbf16, #tpu.memory_space<vmem>>, %arg3: memref<128x128xbf16, #tpu.memory_space<vmem>>, %arg4: memref<1x128xf32, #tpu.memory_space<vmem>>, %arg5: memref<128x128xf32, #tpu.memory_space<vmem>>) attributes {dimension_semantics = [#tpu.dimension_semantics<parallel>, #tpu.dimension_semantics<arbitrary>], iteration_bounds = array<i64: 1, 1>, scalar_prefetch = 0 : i64, scratch_operands = 0 : i64, tpu.core_type = #tpu.core_type<tc>, window_params = [{transform_indices = @transform_0, window_bounds = array<i64: 128, 128>}, {pipeline_mode = #tpu.pipeline_mode<synchronous>, transform_indices = @transform_1, window_bounds = array<i64: 128, 128>}, {pipeline_mode = #tpu.pipeline_mode<synchronous>, transform_indices = @transform_2, window_bounds = array<i64: 1, 128>}, {transform_indices = @transform_3, window_bounds = array<i64: 128, 128>}]} {
    %c0_i32 = arith.constant 0 : i32
    %0 = arith.cmpi eq, %arg1, %c0_i32 : i32
    %1 = arith.extui %0 : i1 to i32
    %c0_i32_0 = arith.constant 0 : i32
    %2 = arith.cmpi ne, %1, %c0_i32_0 : i32
    scf.if %2 {
      %cst_9 = arith.constant 0.000000e+00 : f32
      %15 = vector.broadcast %cst_9 : f32 to vector<128x128xf32>
      %c0_10 = arith.constant 0 : index
      %c0_11 = arith.constant 0 : index
      %16 = vector.load %arg5[%c0_10, %c0_11] : memref<128x128xf32, #tpu.memory_space<vmem>>, vector<128x128xf32>
      tpu.vector_store %arg5[%c0_10, %c0_11], %15 {strides = array<i32>} : memref<128x128xf32, #tpu.memory_space<vmem>>, vector<128x128xf32>,
    } else {
    }
    %c128_i32 = arith.constant 128 : i32
    %3 = arith.muli %arg1, %c128_i32 : i32
    %4 = tpu.assume_multiple %3, 128 : i32
    %5 = arith.index_cast %4 : i32 to index
    %c0 = arith.constant 0 : index
    %6 = vector.load %arg3[%5, %c0] : memref<128x128xbf16, #tpu.memory_space<vmem>>, vector<128x128xbf16>
    %c0_1 = arith.constant 0 : index
    %c0_2 = arith.constant 0 : index
    %7 = vector.load %arg5[%c0_1, %c0_2] : memref<128x128xf32, #tpu.memory_space<vmem>>, vector<128x128xf32>
    %c0_3 = arith.constant 0 : index
    %c0_4 = arith.constant 0 : index
    %8 = vector.load %arg2[%c0_3, %c0_4] : memref<128x128xbf16, #tpu.memory_space<vmem>>, vector<128x128xbf16>
    %cst = arith.constant dense<0.000000e+00> : vector<128x128xf32>
    %9 = tpu.matmul %8, %6, %cst {dimension_numbers = #tpu.dot_dimension_numbers<[1], [0], [0], [1], [0, 0, 1, 1], [], []>} : vector<128x128xbf16>, vector<128x128xbf16>, vector<128x128xf32> -> vector<128x128xf32>
    %10 = arith.addf %7, %9 : vector<128x128xf32>
    %c0_5 = arith.constant 0 : index
    %c0_6 = arith.constant 0 : index
    %11 = vector.load %arg5[%c0_5, %c0_6] : memref<128x128xf32, #tpu.memory_space<vmem>>, vector<128x128xf32>
    tpu.vector_store %arg5[%c0_5, %c0_6], %10 {strides = array<i32>} : memref<128x128xf32, #tpu.memory_space<vmem>>, vector<128x128xf32>,
    %c0_i32_7 = arith.constant 0 : i32
    %12 = arith.cmpi eq, %arg1, %c0_i32_7 : i32
    %13 = arith.extui %12 : i1 to i32
    %c0_i32_8 = arith.constant 0 : i32
    %14 = arith.cmpi ne, %13, %c0_i32_8 : i32
    scf.if %14 {
      %c0_9 = arith.constant 0 : index
      %c0_10 = arith.constant 0 : index
      %15 = vector.load %arg5[%c0_9, %c0_10] : memref<128x128xf32, #tpu.memory_space<vmem>>, vector<128x128xf32>
      %c0_11 = arith.constant 0 : index
      %c0_12 = arith.constant 0 : index
      %16 = vector.load %arg4[%c0_11, %c0_12] : memref<1x128xf32, #tpu.memory_space<vmem>>, vector<1x128xf32>
      %17 = vector.broadcast %16 : vector<1x128xf32> to vector<128x128xf32>
      %18 = arith.addf %15, %17 : vector<128x128xf32>
      %c0_13 = arith.constant 0 : index
      %c0_14 = arith.constant 0 : index
      %19 = vector.load %arg5[%c0_13, %c0_14] : memref<128x128xf32, #tpu.memory_space<vmem>>, vector<128x128xf32>
      tpu.vector_store %arg5[%c0_13, %c0_14], %18 {strides = array<i32>} : memref<128x128xf32, #tpu.memory_space<vmem>>, vector<128x128xf32>,
    } else {
    }
    return
  }
  func.func @transform_0(%arg0: i32, %arg1: i32) -> (i32, i32) {
    %c0_i32 = arith.constant 0 : i32
    return %arg0, %arg1 : i32, i32
  }
  func.func @transform_1(%arg0: i32, %arg1: i32) -> (i32, i32) {
    %c0_i32 = arith.constant 0 : i32
    %c0_i32_0 = arith.constant 0 : i32
    %c0_i32_1 = arith.constant 0 : i32
    return %c0_i32, %c0_i32_0 : i32, i32
  }
  func.func @transform_2(%arg0: i32, %arg1: i32) -> (i32, i32) {
    %c0_i32 = arith.constant 0 : i32
    %c0_i32_0 = arith.constant 0 : i32
    %c0_i32_1 = arith.constant 0 : i32
    return %c0_i32, %c0_i32_0 : i32, i32
  }
  func.func @transform_3(%arg0: i32, %arg1: i32) -> (i32, i32) {
    %c0_i32 = arith.constant 0 : i32
    %c0_i32_0 = arith.constant 0 : i32
    return %arg0, %c0_i32 : i32, i32
  }
}

module attributes {stable_mosaic.version = 11 : i64} {
  func.func @_project_kernel(%arg0: i32, %arg1: memref<128x128xbf16, #tpu.memory_space<vmem>>, %arg2: memref<128x128xbf16, #tpu.memory_space<vmem>>, %arg3: memref<128x128xbf16, #tpu.memory_space<vmem>>) attributes {dimension_semantics = [#tpu.dimension_semantics<parallel>], iteration_bounds = array<i64: 1>, scalar_prefetch = 0 : i64, scratch_operands = 0 : i64, tpu.core_type = #tpu.core_type<tc>, window_params = [{transform_indices = @transform_0, window_bounds = array<i64: 128, 128>}, {pipeline_mode = #tpu.pipeline_mode<synchronous>, transform_indices = @transform_1, window_bounds = array<i64: 128, 128>}, {transform_indices = @transform_2, window_bounds = array<i64: 128, 128>}]} {
    %c0 = arith.constant 0 : index
    %c0_0 = arith.constant 0 : index
    %0 = vector.load %arg1[%c0, %c0_0] : memref<128x128xbf16, #tpu.memory_space<vmem>>, vector<128x128xbf16>
    %c0_1 = arith.constant 0 : index
    %c0_2 = arith.constant 0 : index
    %1 = vector.load %arg2[%c0_1, %c0_2] : memref<128x128xbf16, #tpu.memory_space<vmem>>, vector<128x128xbf16>
    %cst = arith.constant dense<0.000000e+00> : vector<128x128xf32>
    %2 = tpu.matmul %0, %1, %cst {dimension_numbers = #tpu.dot_dimension_numbers<[1], [0], [0], [1], [0, 0, 1, 1], [], []>} : vector<128x128xbf16>, vector<128x128xbf16>, vector<128x128xf32> -> vector<128x128xf32>
    %3 = arith.truncf %2 : vector<128x128xf32> to vector<128x128xbf16>
    %c0_3 = arith.constant 0 : index
    %c0_4 = arith.constant 0 : index
    %4 = vector.load %arg3[%c0_3, %c0_4] : memref<128x128xbf16, #tpu.memory_space<vmem>>, vector<128x128xbf16>
    tpu.vector_store %arg3[%c0_3, %c0_4], %3 {strides = array<i32>} : memref<128x128xbf16, #tpu.memory_space<vmem>>, vector<128x128xbf16>,
    return
  }
  func.func @transform_0(%arg0: i32) -> (i32, i32) {
    %c0_i32 = arith.constant 0 : i32
    %c0_i32_0 = arith.constant 0 : i32
    return %arg0, %c0_i32 : i32, i32
  }
  func.func @transform_1(%arg0: i32) -> (i32, i32) {
    %c0_i32 = arith.constant 0 : i32
    %c0_i32_0 = arith.constant 0 : i32
    %c0_i32_1 = arith.constant 0 : i32
    return %c0_i32, %c0_i32_0 : i32, i32
  }
  func.func @transform_2(%arg0: i32) -> (i32, i32) {
    %c0_i32 = arith.constant 0 : i32
    %c0_i32_0 = arith.constant 0 : i32
    return %arg0, %c0_i32 : i32, i32
  }
}

module attributes {stable_mosaic.version = 11 : i64} {
  func.func @_agg_kernel_scratch(%arg0: i32, %arg1: i32, %arg2: memref<128x128xbf16, #tpu.memory_space<vmem>>, %arg3: memref<128x128xbf16, #tpu.memory_space<vmem>>, %arg4: memref<1x128xf32, #tpu.memory_space<vmem>>, %arg5: memref<128x128xbf16, #tpu.memory_space<vmem>>, %arg6: memref<128x128xf32, #tpu.memory_space<vmem>>) attributes {dimension_semantics = [#tpu.dimension_semantics<parallel>, #tpu.dimension_semantics<arbitrary>], iteration_bounds = array<i64: 1, 1>, scalar_prefetch = 0 : i64, scratch_operands = 1 : i64, tpu.core_type = #tpu.core_type<tc>, window_params = [{transform_indices = @transform_0, window_bounds = array<i64: 128, 128>}, {pipeline_mode = #tpu.pipeline_mode<synchronous>, transform_indices = @transform_1, window_bounds = array<i64: 128, 128>}, {pipeline_mode = #tpu.pipeline_mode<synchronous>, transform_indices = @transform_2, window_bounds = array<i64: 1, 128>}, {transform_indices = @transform_3, window_bounds = array<i64: 128, 128>}]} {
    %c0_i32 = arith.constant 0 : i32
    %0 = arith.cmpi eq, %arg1, %c0_i32 : i32
    %1 = arith.extui %0 : i1 to i32
    %c0_i32_0 = arith.constant 0 : i32
    %2 = arith.cmpi ne, %1, %c0_i32_0 : i32
    scf.if %2 {
      %cst_9 = arith.constant 0.000000e+00 : f32
      %15 = vector.broadcast %cst_9 : f32 to vector<128x128xf32>
      %c0_10 = arith.constant 0 : index
      %c0_11 = arith.constant 0 : index
      %16 = vector.load %arg6[%c0_10, %c0_11] : memref<128x128xf32, #tpu.memory_space<vmem>>, vector<128x128xf32>
      tpu.vector_store %arg6[%c0_10, %c0_11], %15 {strides = array<i32>} : memref<128x128xf32, #tpu.memory_space<vmem>>, vector<128x128xf32>,
    } else {
    }
    %c128_i32 = arith.constant 128 : i32
    %3 = arith.muli %arg1, %c128_i32 : i32
    %4 = tpu.assume_multiple %3, 128 : i32
    %5 = arith.index_cast %4 : i32 to index
    %c0 = arith.constant 0 : index
    %6 = vector.load %arg3[%5, %c0] : memref<128x128xbf16, #tpu.memory_space<vmem>>, vector<128x128xbf16>
    %c0_1 = arith.constant 0 : index
    %c0_2 = arith.constant 0 : index
    %7 = vector.load %arg6[%c0_1, %c0_2] : memref<128x128xf32, #tpu.memory_space<vmem>>, vector<128x128xf32>
    %c0_3 = arith.constant 0 : index
    %c0_4 = arith.constant 0 : index
    %8 = vector.load %arg2[%c0_3, %c0_4] : memref<128x128xbf16, #tpu.memory_space<vmem>>, vector<128x128xbf16>
    %cst = arith.constant dense<0.000000e+00> : vector<128x128xf32>
    %9 = tpu.matmul %8, %6, %cst {dimension_numbers = #tpu.dot_dimension_numbers<[1], [0], [0], [1], [0, 0, 1, 1], [], []>} : vector<128x128xbf16>, vector<128x128xbf16>, vector<128x128xf32> -> vector<128x128xf32>
    %10 = arith.addf %7, %9 : vector<128x128xf32>
    %c0_5 = arith.constant 0 : index
    %c0_6 = arith.constant 0 : index
    %11 = vector.load %arg6[%c0_5, %c0_6] : memref<128x128xf32, #tpu.memory_space<vmem>>, vector<128x128xf32>
    tpu.vector_store %arg6[%c0_5, %c0_6], %10 {strides = array<i32>} : memref<128x128xf32, #tpu.memory_space<vmem>>, vector<128x128xf32>,
    %c0_i32_7 = arith.constant 0 : i32
    %12 = arith.cmpi eq, %arg1, %c0_i32_7 : i32
    %13 = arith.extui %12 : i1 to i32
    %c0_i32_8 = arith.constant 0 : i32
    %14 = arith.cmpi ne, %13, %c0_i32_8 : i32
    scf.if %14 {
      %c0_9 = arith.constant 0 : index
      %c0_10 = arith.constant 0 : index
      %15 = vector.load %arg6[%c0_9, %c0_10] : memref<128x128xf32, #tpu.memory_space<vmem>>, vector<128x128xf32>
      %c0_11 = arith.constant 0 : index
      %c0_12 = arith.constant 0 : index
      %16 = vector.load %arg4[%c0_11, %c0_12] : memref<1x128xf32, #tpu.memory_space<vmem>>, vector<1x128xf32>
      %17 = vector.broadcast %16 : vector<1x128xf32> to vector<128x128xf32>
      %18 = arith.addf %15, %17 : vector<128x128xf32>
      %cst_13 = arith.constant 0.000000e+00 : f32
      %19 = vector.broadcast %cst_13 : f32 to vector<128x128xf32>
      %20 = arith.maximumf %18, %19 : vector<128x128xf32>
      %21 = arith.truncf %20 : vector<128x128xf32> to vector<128x128xbf16>
      %c0_14 = arith.constant 0 : index
      %c0_15 = arith.constant 0 : index
      %22 = vector.load %arg5[%c0_14, %c0_15] : memref<128x128xbf16, #tpu.memory_space<vmem>>, vector<128x128xbf16>
      tpu.vector_store %arg5[%c0_14, %c0_15], %21 {strides = array<i32>} : memref<128x128xbf16, #tpu.memory_space<vmem>>, vector<128x128xbf16>,
    } else {
    }
    return
  }
  func.func @transform_0(%arg0: i32, %arg1: i32) -> (i32, i32) {
    %c0_i32 = arith.constant 0 : i32
    return %arg0, %arg1 : i32, i32
  }
  func.func @transform_1(%arg0: i32, %arg1: i32) -> (i32, i32) {
    %c0_i32 = arith.constant 0 : i32
    %c0_i32_0 = arith.constant 0 : i32
    %c0_i32_1 = arith.constant 0 : i32
    return %c0_i32, %c0_i32_0 : i32, i32
  }
  func.func @transform_2(%arg0: i32, %arg1: i32) -> (i32, i32) {
    %c0_i32 = arith.constant 0 : i32
    %c0_i32_0 = arith.constant 0 : i32
    %c0_i32_1 = arith.constant 0 : i32
    return %c0_i32, %c0_i32_0 : i32, i32
  }
  func.func @transform_3(%arg0: i32, %arg1: i32) -> (i32, i32) {
    %c0_i32 = arith.constant 0 : i32
    %c0_i32_0 = arith.constant 0 : i32
    return %arg0, %c0_i32 : i32, i32
  }
}

</mosaic_0001>

<llo_original>
// kernel: gcn_forward.4
$region0: #{gcn_forward.4}
  #allocation0 [shape = 'u32[]', space=smem, size = 0x4, offset = 0x4, fixed_abs, tag = 'smem constant byte address 0x4 - core index']
  #allocation1 [shape = 'u32[72,128]{1,0:T(1,128)}', space=vmem, size = 0x9000, scoped, tag = 'internal scratch']
  %s0 = inlined_call_operand.vmem [shape: bf16[128,128], index: 0, kind: input, shape index: {}]
  %s1 = inlined_call_operand.vmem [shape: bf16[128,128], index: 1, kind: input, shape index: {}]
  %s2 = inlined_call_operand.vmem [shape: bf16[128,128], index: 2, kind: output, shape index: {}]
  %s3 = sld [smem:[#allocation0]]
  $region18: #{gcn_forward.4} parent=0
    _
  %s5 = ssub.s32 1, %s3
  %s6 = scalar_select 0, %s5, %s3
  // Predicated region
  $region2: #{gcn_forward.4} parent=0 // pred_check
    _
  $region3: #{gcn_forward.4} parent=0 // pred_check_branch
    %8 = sbr.rel (0) target = $region5
  $region4: #{gcn_forward.4} parent=0 // pred_region
    _
  $region5: #{gcn_forward.4} parent=0 // pred_fallthru
    _
  // Predicated region
  $region6: #{gcn_forward.4} parent=0 // pred_check
    _
  $region7: #{gcn_forward.4} parent=0 // pred_check_branch
    %10 = sbr.rel (0) target = $region9
  $region8: #{gcn_forward.4} parent=0 // pred_region
    _
  $region9: #{gcn_forward.4} parent=0 // pred_fallthru
    _
  %v11 = vld [vmem:[%s0] sm:$0xf]
  %v12 = vld [vmem:[%s0 + $0x4] sm:$0xf]
  %v13 = vld [vmem:[%s0 + $0x8] sm:$0xf]
  %v14 = vld [vmem:[%s0 + $0xc] sm:$0xf]
  %v15 = vld [vmem:[%s0 + $0x10] sm:$0xf]
  %v16 = vld [vmem:[%s0 + $0x14] sm:$0xf]
  %v17 = vld [vmem:[%s0 + $0x18] sm:$0xf]
  %v18 = vld [vmem:[%s0 + $0x1c] sm:$0xf]
  %v19 = vld [vmem:[%s0 + $0x20] sm:$0xf]
  %v20 = vld [vmem:[%s0 + $0x24] sm:$0xf]
  %v21 = vld [vmem:[%s0 + $0x28] sm:$0xf]
  %v22 = vld [vmem:[%s0 + $0x2c] sm:$0xf]
  %v23 = vld [vmem:[%s0 + $0x30] sm:$0xf]
  %v24 = vld [vmem:[%s0 + $0x34] sm:$0xf]
  %v25 = vld [vmem:[%s0 + $0x38] sm:$0xf]
  %v26 = vld [vmem:[%s0 + $0x3c] sm:$0xf]
  %v27 = vld [vmem:[%s1] sm:$0xf]
  %v28 = vld [vmem:[%s1 + $0x4] sm:$0xf]
  %v29 = vld [vmem:[%s1 + $0x8] sm:$0xf]
  %v30 = vld [vmem:[%s1 + $0xc] sm:$0xf]
  %v31 = vld [vmem:[%s1 + $0x10] sm:$0xf]
  %v32 = vld [vmem:[%s1 + $0x14] sm:$0xf]
  %v33 = vld [vmem:[%s1 + $0x18] sm:$0xf]
  %v34 = vld [vmem:[%s1 + $0x1c] sm:$0xf]
  %v35 = vld [vmem:[%s1 + $0x20] sm:$0xf]
  %v36 = vld [vmem:[%s1 + $0x24] sm:$0xf]
  %v37 = vld [vmem:[%s1 + $0x28] sm:$0xf]
  %v38 = vld [vmem:[%s1 + $0x2c] sm:$0xf]
  %v39 = vld [vmem:[%s1 + $0x30] sm:$0xf]
  %v40 = vld [vmem:[%s1 + $0x34] sm:$0xf]
  %v41 = vld [vmem:[%s1 + $0x38] sm:$0xf]
  %v42 = vld [vmem:[%s1 + $0x3c] sm:$0xf]
  %v59 = vunpack.c.l.b16 %v11
  %v60 = vunpack.c.l.b16 %v12
  %v61 = vunpack.c.l.b16 %v13
  %v62 = vunpack.c.l.b16 %v14
  %v63 = vunpack.c.l.b16 %v15
  %v64 = vunpack.c.l.b16 %v16
  %v65 = vunpack.c.l.b16 %v17
  %v66 = vunpack.c.l.b16 %v18
  %v67 = vunpack.c.l.b16 %v19
  %v68 = vunpack.c.l.b16 %v20
  %v69 = vunpack.c.l.b16 %v21
  %v70 = vunpack.c.l.b16 %v22
  %v71 = vunpack.c.l.b16 %v23
  %v72 = vunpack.c.l.b16 %v24
  %v73 = vunpack.c.l.b16 %v25
  %v74 = vunpack.c.l.b16 %v26
  %v75 = vpack.c.b16 %v60, %v59
  %v76 = vpack.c.b16 %v62, %v61
  %v77 = vpack.c.b16 %v64, %v63
  %v78 = vpack.c.b16 %v66, %v65
  %v79 = vpack.c.b16 %v68, %v67
  %v80 = vpack.c.b16 %v70, %v69
  %v81 = vpack.c.b16 %v72, %v71
  %v82 = vpack.c.b16 %v74, %v73
  %v107 = vunpack.c.l.b16 %v27
  %v108 = vunpack.c.l.b16 %v28
  %v109 = vunpack.c.l.b16 %v29
  %v110 = vunpack.c.l.b16 %v30
  %v111 = vunpack.c.l.b16 %v31
  %v112 = vunpack.c.l.b16 %v32
  %v113 = vunpack.c.l.b16 %v33
  %v114 = vunpack.c.l.b16 %v34
  %v115 = vunpack.c.l.b16 %v35
  %v116 = vunpack.c.l.b16 %v36
  %v117 = vunpack.c.l.b16 %v37
  %v118 = vunpack.c.l.b16 %v38
  %v119 = vunpack.c.l.b16 %v39
  %v120 = vunpack.c.l.b16 %v40
  %v121 = vunpack.c.l.b16 %v41
  %v122 = vunpack.c.l.b16 %v42
  %v123 = vpack.c.b16 %v108, %v107
  %v124 = vpack.c.b16 %v110, %v109
  %v125 = vpack.c.b16 %v112, %v111
  %v126 = vpack.c.b16 %v114, %v113
  %v127 = vpack.c.b16 %v116, %v115
  %v128 = vpack.c.b16 %v118, %v117
  %v129 = vpack.c.b16 %v120, %v119
  %v130 = vpack.c.b16 %v122, %v121
  %139 = vmatpush.bf16.msra.mxu0 %v130
  %140 = vmatpush.bf16.msra.mxu0 %v129
  %141 = vmatpush.bf16.msra.mxu0 %v128
  %142 = vmatpush.bf16.msra.mxu0 %v127
  %143 = vmatpush.bf16.msra.mxu0 %v126
  %144 = vmatpush.bf16.msra.mxu0 %v125
  %145 = vmatpush.bf16.msra.mxu0 %v124
  %146 = vmatpush.bf16.msra.mxu0 %v123
  %147 = vmatmul.bf16.gmra.mxu0 %v75
  %v148 = vpop.f32.mrf.mxu0
  %v149 = vadd.f32 0.0, %v148
  %v150 = vpop.f32.mrf.mxu0
  %v151 = vadd.f32 0.0, %v150
  %152 = vmatmul.bf16.gmra.mxu0 %v76
  %v153 = vpop.f32.mrf.mxu0
  %v154 = vadd.f32 0.0, %v153
  %v155 = vpop.f32.mrf.mxu0
  %v156 = vadd.f32 0.0, %v155
  %157 = vmatmul.bf16.gmra.mxu0 %v77
  %v158 = vpop.f32.mrf.mxu0
  %v159 = vadd.f32 0.0, %v158
  %v160 = vpop.f32.mrf.mxu0
  %v161 = vadd.f32 0.0, %v160
  %162 = vmatmul.bf16.gmra.mxu0 %v78
  %v163 = vpop.f32.mrf.mxu0
  %v164 = vadd.f32 0.0, %v163
  %v165 = vpop.f32.mrf.mxu0
  %v166 = vadd.f32 0.0, %v165
  %167 = vmatmul.bf16.gmra.mxu0 %v79
  %v168 = vpop.f32.mrf.mxu0
  %v169 = vadd.f32 0.0, %v168
  %v170 = vpop.f32.mrf.mxu0
  %v171 = vadd.f32 0.0, %v170
  %172 = vmatmul.bf16.gmra.mxu0 %v80
  %v173 = vpop.f32.mrf.mxu0
  %v174 = vadd.f32 0.0, %v173
  %v175 = vpop.f32.mrf.mxu0
  %v176 = vadd.f32 0.0, %v175
  %177 = vmatmul.bf16.gmra.mxu0 %v81
  %v178 = vpop.f32.mrf.mxu0
  %v179 = vadd.f32 0.0, %v178
  %v180 = vpop.f32.mrf.mxu0
  %v181 = vadd.f32 0.0, %v180
  %182 = vmatmul.bf16.gmra.mxu0 %v82
  %v183 = vpop.f32.mrf.mxu0
  %v184 = vadd.f32 0.0, %v183
  %v185 = vpop.f32.mrf.mxu0
  %v186 = vadd.f32 0.0, %v185
  %187 = vdwg.mxu0
  %v188 = vpack.c.bf16 %v149, %v149
  %v189 = vpack.c.bf16 %v151, %v151
  %v190 = vpack.c.bf16 %v154, %v154
  %v191 = vpack.c.bf16 %v156, %v156
  %v192 = vpack.c.bf16 %v159, %v159
  %v193 = vpack.c.bf16 %v161, %v161
  %v194 = vpack.c.bf16 %v164, %v164
  %v195 = vpack.c.bf16 %v166, %v166
  %v196 = vpack.c.bf16 %v169, %v169
  %v197 = vpack.c.bf16 %v171, %v171
  %v198 = vpack.c.bf16 %v174, %v174
  %v199 = vpack.c.bf16 %v176, %v176
  %v200 = vpack.c.bf16 %v179, %v179
  %v201 = vpack.c.bf16 %v181, %v181
  %v202 = vpack.c.bf16 %v184, %v184
  %v203 = vpack.c.bf16 %v186, %v186
  %204 = vst [vmem:[%s2] sm:$0xf] %v188
  %205 = vst [vmem:[%s2 + $0x4] sm:$0xf] %v189
  %206 = vst [vmem:[%s2 + $0x8] sm:$0xf] %v190
  %207 = vst [vmem:[%s2 + $0xc] sm:$0xf] %v191
  %208 = vst [vmem:[%s2 + $0x10] sm:$0xf] %v192
  %209 = vst [vmem:[%s2 + $0x14] sm:$0xf] %v193
  %210 = vst [vmem:[%s2 + $0x18] sm:$0xf] %v194
  %211 = vst [vmem:[%s2 + $0x1c] sm:$0xf] %v195
  %212 = vst [vmem:[%s2 + $0x20] sm:$0xf] %v196
  %213 = vst [vmem:[%s2 + $0x24] sm:$0xf] %v197
  %214 = vst [vmem:[%s2 + $0x28] sm:$0xf] %v198
  %215 = vst [vmem:[%s2 + $0x2c] sm:$0xf] %v199
  %216 = vst [vmem:[%s2 + $0x30] sm:$0xf] %v200
  %217 = vst [vmem:[%s2 + $0x34] sm:$0xf] %v201
  %218 = vst [vmem:[%s2 + $0x38] sm:$0xf] %v202
  %219 = vst [vmem:[%s2 + $0x3c] sm:$0xf] %v203
  // Predicated region
  $region10: #{gcn_forward.4} parent=0 // pred_check
    _
  $region11: #{gcn_forward.4} parent=0 // pred_check_branch
    %221 = sbr.rel (0) target = $region13
  $region12: #{gcn_forward.4} parent=0 // pred_region
    _
  $region13: #{gcn_forward.4} parent=0 // pred_fallthru
    _
  // Predicated region
  $region14: #{gcn_forward.4} parent=0 // pred_check
    _
  $region15: #{gcn_forward.4} parent=0 // pred_check_branch
    %223 = sbr.rel (0) target = $region17
  $region16: #{gcn_forward.4} parent=0 // pred_region
    _
  $region17: #{gcn_forward.4} parent=0 // pred_fallthru
    _

// kernel: gcn_forward.6
$region0: #{gcn_forward.6}
  #allocation0 [shape = 'u32[]', space=smem, size = 0x4, offset = 0x4, fixed_abs, tag = 'smem constant byte address 0x4 - core index']
  #allocation1 [shape = 'u32[72,128]{1,0:T(1,128)}', space=vmem, size = 0x9000, scoped, tag = 'internal scratch']
  %s0 = inlined_call_operand.vmem [shape: bf16[128,128], index: 0, kind: input, shape index: {}]
  %s1 = inlined_call_operand.hbm [shape: bf16[128,128], index: 1, kind: input, shape index: {}]
  %s2 = inlined_call_operand.vmem [shape: bf16[128,128], index: 2, kind: output, shape index: {}]
  %s3 = sld [smem:[#allocation0]]
  $region22: #{gcn_forward.6} parent=0
    _
  %s5 = ssub.s32 1, %s3
  %s6 = scalar_select 0, %s5, %s3
  $region1: #{gcn_forward.6} parent=0
    #allocation2 [shape = 'u8[32768]{0}', space=vmem, size = 0x8000, scoped, tag = 'input window, operand 1, single buffered']
    #allocation3 [shape = 's32[1]{0}', space=sflag, size = 0x4, scoped, tag = 'scoped memory for gcn_forward.6']
    %7 = vsyncpa [#allocation3], 0
    // Predicated region
    $region2: #{gcn_forward.6} parent=1 // pred_check
      _
    $region3: #{gcn_forward.6} parent=1 // pred_check_branch
      %9 = sbr.rel (0) target = $region5
    $region4: #{gcn_forward.6} parent=1 // pred_region
      _
    $region5: #{gcn_forward.6} parent=1 // pred_fallthru
      _
    // Predicated region
    $region6: #{gcn_forward.6} parent=1 // pred_check
      _
    $region7: #{gcn_forward.6} parent=1 // pred_check_branch
      %11 = sbr.rel (0) target = $region9
    $region8: #{gcn_forward.6} parent=1 // pred_region
      %13 = vsyncadd [#allocation3], 0
      %s14 = sshll.u32 %s1, 4
      %s15 = int_to_ptr.hbm [resolvable:$true] %s14
      %s16 = sshll.u32 [#allocation2], 4
      %s17 = int_to_ptr.vmem [resolvable:$true] %s16
      %22 = dma.hbm_to_vmem [thread:$0]  %s15, 1024, %s17, [#allocation3], 64, 64, 4
    $region9: #{gcn_forward.6} parent=1 // pred_fallthru
      _
    // Predicated region
    $region10: #{gcn_forward.6} parent=1 // pred_check
      _
    $region11: #{gcn_forward.6} parent=1 // pred_check_branch
      %24 = sbr.rel (0) target = $region13
    $region12: #{gcn_forward.6} parent=1 // pred_region
      %26 = dma.done [#allocation3], 1024
    $region13: #{gcn_forward.6} parent=1 // pred_fallthru
      _
    %v27 = vld [vmem:[%s0] sm:$0xf]
    %v28 = vld [vmem:[%s0 + $0x4] sm:$0xf]
    %v29 = vld [vmem:[%s0 + $0x8] sm:$0xf]
    %v30 = vld [vmem:[%s0 + $0xc] sm:$0xf]
    %v31 = vld [vmem:[%s0 + $0x10] sm:$0xf]
    %v32 = vld [vmem:[%s0 + $0x14] sm:$0xf]
    %v33 = vld [vmem:[%s0 + $0x18] sm:$0xf]
    %v34 = vld [vmem:[%s0 + $0x1c] sm:$0xf]
    %v35 = vld [vmem:[%s0 + $0x20] sm:$0xf]
    %v36 = vld [vmem:[%s0 + $0x24] sm:$0xf]
    %v37 = vld [vmem:[%s0 + $0x28] sm:$0xf]
    %v38 = vld [vmem:[%s0 + $0x2c] sm:$0xf]
    %v39 = vld [vmem:[%s0 + $0x30] sm:$0xf]
    %v40 = vld [vmem:[%s0 + $0x34] sm:$0xf]
    %v41 = vld [vmem:[%s0 + $0x38] sm:$0xf]
    %v42 = vld [vmem:[%s0 + $0x3c] sm:$0xf]
    %v43 = vld [vmem:[#allocation2] sm:$0xf]
    %v44 = vld [vmem:[#allocation2 + $0x4] sm:$0xf]
    %v45 = vld [vmem:[#allocation2 + $0x8] sm:$0xf]
    %v46 = vld [vmem:[#allocation2 + $0xc] sm:$0xf]
    %v47 = vld [vmem:[#allocation2 + $0x10] sm:$0xf]
    %v48 = vld [vmem:[#allocation2 + $0x14] sm:$0xf]
    %v49 = vld [vmem:[#allocation2 + $0x18] sm:$0xf]
    %v50 = vld [vmem:[#allocation2 + $0x1c] sm:$0xf]
    %v51 = vld [vmem:[#allocation2 + $0x20] sm:$0xf]
    %v52 = vld [vmem:[#allocation2 + $0x24] sm:$0xf]
    %v53 = vld [vmem:[#allocation2 + $0x28] sm:$0xf]
    %v54 = vld [vmem:[#allocation2 + $0x2c] sm:$0xf]
    %v55 = vld [vmem:[#allocation2 + $0x30] sm:$0xf]
    %v56 = vld [vmem:[#allocation2 + $0x34] sm:$0xf]
    %v57 = vld [vmem:[#allocation2 + $0x38] sm:$0xf]
    %v58 = vld [vmem:[#allocation2 + $0x3c] sm:$0xf]
    %v75 = vunpack.c.l.b16 %v27
    %v76 = vunpack.c.l.b16 %v28
    %v77 = vunpack.c.l.b16 %v29
    %v78 = vunpack.c.l.b16 %v30
    %v79 = vunpack.c.l.b16 %v31
    %v80 = vunpack.c.l.b16 %v32
    %v81 = vunpack.c.l.b16 %v33
    %v82 = vunpack.c.l.b16 %v34
    %v83 = vunpack.c.l.b16 %v35
    %v84 = vunpack.c.l.b16 %v36
    %v85 = vunpack.c.l.b16 %v37
    %v86 = vunpack.c.l.b16 %v38
    %v87 = vunpack.c.l.b16 %v39
    %v88 = vunpack.c.l.b16 %v40
    %v89 = vunpack.c.l.b16 %v41
    %v90 = vunpack.c.l.b16 %v42
    %v91 = vpack.c.b16 %v76, %v75
    %v92 = vpack.c.b16 %v78, %v77
    %v93 = vpack.c.b16 %v80, %v79
    %v94 = vpack.c.b16 %v82, %v81
    %v95 = vpack.c.b16 %v84, %v83
    %v96 = vpack.c.b16 %v86, %v85
    %v97 = vpack.c.b16 %v88, %v87
    %v98 = vpack.c.b16 %v90, %v89
    %v123 = vunpack.c.l.b16 %v43
    %v124 = vunpack.c.l.b16 %v44
    %v125 = vunpack.c.l.b16 %v45
    %v126 = vunpack.c.l.b16 %v46
    %v127 = vunpack.c.l.b16 %v47
    %v128 = vunpack.c.l.b16 %v48
    %v129 = vunpack.c.l.b16 %v49
    %v130 = vunpack.c.l.b16 %v50
    %v131 = vunpack.c.l.b16 %v51
    %v132 = vunpack.c.l.b16 %v52
    %v133 = vunpack.c.l.b16 %v53
    %v134 = vunpack.c.l.b16 %v54
    %v135 = vunpack.c.l.b16 %v55
    %v136 = vunpack.c.l.b16 %v56
    %v137 = vunpack.c.l.b16 %v57
    %v138 = vunpack.c.l.b16 %v58
    %v139 = vpack.c.b16 %v124, %v123
    %v140 = vpack.c.b16 %v126, %v125
    %v141 = vpack.c.b16 %v128, %v127
    %v142 = vpack.c.b16 %v130, %v129
    %v143 = vpack.c.b16 %v132, %v131
    %v144 = vpack.c.b16 %v134, %v133
    %v145 = vpack.c.b16 %v136, %v135
    %v146 = vpack.c.b16 %v138, %v137
    %155 = vmatpush.bf16.msra.mxu0 %v146
    %156 = vmatpush.bf16.msra.mxu0 %v145
    %157 = vmatpush.bf16.msra.mxu0 %v144
    %158 = vmatpush.bf16.msra.mxu0 %v143
    %159 = vmatpush.bf16.msra.mxu0 %v142
    %160 = vmatpush.bf16.msra.mxu0 %v141
    %161 = vmatpush.bf16.msra.mxu0 %v140
    %162 = vmatpush.bf16.msra.mxu0 %v139
    %163 = vmatmul.bf16.gmra.mxu0 %v91
    %v164 = vpop.f32.mrf.mxu0
    %v165 = vadd.f32 0.0, %v164
    %v166 = vpop.f32.mrf.mxu0
    %v167 = vadd.f32 0.0, %v166
    %168 = vmatmul.bf16.gmra.mxu0 %v92
    %v169 = vpop.f32.mrf.mxu0
    %v170 = vadd.f32 0.0, %v169
    %v171 = vpop.f32.mrf.mxu0
    %v172 = vadd.f32 0.0, %v171
    %173 = vmatmul.bf16.gmra.mxu0 %v93
    %v174 = vpop.f32.mrf.mxu0
    %v175 = vadd.f32 0.0, %v174
    %v176 = vpop.f32.mrf.mxu0
    %v177 = vadd.f32 0.0, %v176
    %178 = vmatmul.bf16.gmra.mxu0 %v94
    %v179 = vpop.f32.mrf.mxu0
    %v180 = vadd.f32 0.0, %v179
    %v181 = vpop.f32.mrf.mxu0
    %v182 = vadd.f32 0.0, %v181
    %183 = vmatmul.bf16.gmra.mxu0 %v95
    %v184 = vpop.f32.mrf.mxu0
    %v185 = vadd.f32 0.0, %v184
    %v186 = vpop.f32.mrf.mxu0
    %v187 = vadd.f32 0.0, %v186
    %188 = vmatmul.bf16.gmra.mxu0 %v96
    %v189 = vpop.f32.mrf.mxu0
    %v190 = vadd.f32 0.0, %v189
    %v191 = vpop.f32.mrf.mxu0
    %v192 = vadd.f32 0.0, %v191
    %193 = vmatmul.bf16.gmra.mxu0 %v97
    %v194 = vpop.f32.mrf.mxu0
    %v195 = vadd.f32 0.0, %v194
    %v196 = vpop.f32.mrf.mxu0
    %v197 = vadd.f32 0.0, %v196
    %198 = vmatmul.bf16.gmra.mxu0 %v98
    %v199 = vpop.f32.mrf.mxu0
    %v200 = vadd.f32 0.0, %v199
    %v201 = vpop.f32.mrf.mxu0
    %v202 = vadd.f32 0.0, %v201
    %203 = vdwg.mxu0
    %v204 = vpack.c.bf16 %v165, %v165
    %v205 = vpack.c.bf16 %v167, %v167
    %v206 = vpack.c.bf16 %v170, %v170
    %v207 = vpack.c.bf16 %v172, %v172
    %v208 = vpack.c.bf16 %v175, %v175
    %v209 = vpack.c.bf16 %v177, %v177
    %v210 = vpack.c.bf16 %v180, %v180
    %v211 = vpack.c.bf16 %v182, %v182
    %v212 = vpack.c.bf16 %v185, %v185
    %v213 = vpack.c.bf16 %v187, %v187
    %v214 = vpack.c.bf16 %v190, %v190
    %v215 = vpack.c.bf16 %v192, %v192
    %v216 = vpack.c.bf16 %v195, %v195
    %v217 = vpack.c.bf16 %v197, %v197
    %v218 = vpack.c.bf16 %v200, %v200
    %v219 = vpack.c.bf16 %v202, %v202
    %220 = vst [vmem:[%s2] sm:$0xf] %v204
    %221 = vst [vmem:[%s2 + $0x4] sm:$0xf] %v205
    %222 = vst [vmem:[%s2 + $0x8] sm:$0xf] %v206
    %223 = vst [vmem:[%s2 + $0xc] sm:$0xf] %v207
    %224 = vst [vmem:[%s2 + $0x10] sm:$0xf] %v208
    %225 = vst [vmem:[%s2 + $0x14] sm:$0xf] %v209
    %226 = vst [vmem:[%s2 + $0x18] sm:$0xf] %v210
    %227 = vst [vmem:[%s2 + $0x1c] sm:$0xf] %v211
    %228 = vst [vmem:[%s2 + $0x20] sm:$0xf] %v212
    %229 = vst [vmem:[%s2 + $0x24] sm:$0xf] %v213
    %230 = vst [vmem:[%s2 + $0x28] sm:$0xf] %v214
    %231 = vst [vmem:[%s2 + $0x2c] sm:$0xf] %v215
    %232 = vst [vmem:[%s2 + $0x30] sm:$0xf] %v216
    %233 = vst [vmem:[%s2 + $0x34] sm:$0xf] %v217
    %234 = vst [vmem:[%s2 + $0x38] sm:$0xf] %v218
    %235 = vst [vmem:[%s2 + $0x3c] sm:$0xf] %v219
    // Predicated region
    $region14: #{gcn_forward.6} parent=1 // pred_check
      _
    $region15: #{gcn_forward.6} parent=1 // pred_check_branch
      %237 = sbr.rel (0) target = $region17
    $region16: #{gcn_forward.6} parent=1 // pred_region
      _
    $region17: #{gcn_forward.6} parent=1 // pred_fallthru
      _
    // Predicated region
    $region18: #{gcn_forward.6} parent=1 // pred_check
      _
    $region19: #{gcn_forward.6} parent=1 // pred_check_branch
      %239 = sbr.rel (0) target = $region21
    $region20: #{gcn_forward.6} parent=1 // pred_region
      _
    $region21: #{gcn_forward.6} parent=1 // pred_fallthru
      _
    %240 = vsyncpa [#allocation3], 1

// kernel: gcn_forward.7
$region0: #{gcn_forward.7}
  #allocation0 [shape = 'u32[]', space=smem, size = 0x4, offset = 0x4, fixed_abs, tag = 'smem constant byte address 0x4 - core index']
  #allocation1 [shape = 'u32[72,128]{1,0:T(1,128)}', space=vmem, size = 0x9000, scoped, tag = 'internal scratch']
  %s0 = inlined_call_operand.hbm [shape: bf16[128,128], index: 0, kind: input, shape index: {}]
  %s1 = inlined_call_operand.vmem [shape: bf16[128,128], index: 1, kind: input, shape index: {}]
  %s2 = inlined_call_operand.vmem [shape: f32[1,128], index: 2, kind: input, shape index: {}]
  %s3 = inlined_call_operand.vmem [shape: f32[128,128], index: 3, kind: output, shape index: {}]
  %s4 = sld [smem:[#allocation0]]
  $region34: #{gcn_forward.7} parent=0
    _
  %s6 = ssub.s32 1, %s4
  %s7 = scalar_select 0, %s6, %s4
  $region1: #{gcn_forward.7} parent=0
    #allocation2 [shape = 'u8[32768]{0}', space=vmem, size = 0x8000, scoped, tag = 'input window, operand 0, single buffered']
    #allocation3 [shape = 's32[1]{0}', space=sflag, size = 0x4, scoped, tag = 'scoped memory for gcn_forward.7']
    %8 = vsyncpa [#allocation3], 0
    // Predicated region
    $region2: #{gcn_forward.7} parent=1 // pred_check
      _
    $region3: #{gcn_forward.7} parent=1 // pred_check_branch
      %10 = sbr.rel (0) target = $region5
    $region4: #{gcn_forward.7} parent=1 // pred_region
      %12 = vsyncadd [#allocation3], 0
      %s13 = sshll.u32 %s0, 4
      %s14 = int_to_ptr.hbm [resolvable:$true] %s13
      %s15 = sshll.u32 [#allocation2], 4
      %s16 = int_to_ptr.vmem [resolvable:$true] %s15
      %21 = dma.hbm_to_vmem [thread:$0]  %s14, 1024, %s16, [#allocation3], 64, 64, 4
    $region5: #{gcn_forward.7} parent=1 // pred_fallthru
      _
    // Predicated region
    $region6: #{gcn_forward.7} parent=1 // pred_check
      _
    $region7: #{gcn_forward.7} parent=1 // pred_check_branch
      %23 = sbr.rel (0) target = $region9
    $region8: #{gcn_forward.7} parent=1 // pred_region
      _
    $region9: #{gcn_forward.7} parent=1 // pred_fallthru
      _
    // Predicated region
    $region10: #{gcn_forward.7} parent=1 // pred_check
      _
    $region11: #{gcn_forward.7} parent=1 // pred_check_branch
      %25 = sbr.rel (0) target = $region13
    $region12: #{gcn_forward.7} parent=1 // pred_region
      _
    $region13: #{gcn_forward.7} parent=1 // pred_fallthru
      _
    // Predicated region
    $region14: #{gcn_forward.7} parent=1 // pred_check
      _
    $region15: #{gcn_forward.7} parent=1 // pred_check_branch
      %27 = sbr.rel (0) target = $region17
    $region16: #{gcn_forward.7} parent=1 // pred_region
      %29 = dma.done [#allocation3], 1024
    $region17: #{gcn_forward.7} parent=1 // pred_fallthru
      _
    %p30 = scmp.eq.s32.totalorder 0, 0
    // Predicated region
    $region18: #{gcn_forward.7} parent=1 // pred_check
      %p31 = pneg %p30
    $region19: #{gcn_forward.7} parent=1 // pred_check_branch
      %33 = sbr.rel (%p31) target = $region21
    $region20: #{gcn_forward.7} parent=1 // pred_region
      %34 = vst [vmem:[%s3] sm:$0xff] 0.0
      %35 = vst [vmem:[%s3 + $0x8] sm:$0xff] 0.0
      %36 = vst [vmem:[%s3 + $0x10] sm:$0xff] 0.0
      %37 = vst [vmem:[%s3 + $0x18] sm:$0xff] 0.0
      %38 = vst [vmem:[%s3 + $0x20] sm:$0xff] 0.0
      %39 = vst [vmem:[%s3 + $0x28] sm:$0xff] 0.0
      %40 = vst [vmem:[%s3 + $0x30] sm:$0xff] 0.0
      %41 = vst [vmem:[%s3 + $0x38] sm:$0xff] 0.0
      %42 = vst [vmem:[%s3 + $0x40] sm:$0xff] 0.0
      %43 = vst [vmem:[%s3 + $0x48] sm:$0xff] 0.0
      %44 = vst [vmem:[%s3 + $0x50] sm:$0xff] 0.0
      %45 = vst [vmem:[%s3 + $0x58] sm:$0xff] 0.0
      %46 = vst [vmem:[%s3 + $0x60] sm:$0xff] 0.0
      %47 = vst [vmem:[%s3 + $0x68] sm:$0xff] 0.0
      %48 = vst [vmem:[%s3 + $0x70] sm:$0xff] 0.0
      %49 = vst [vmem:[%s3 + $0x78] sm:$0xff] 0.0
    $region21: #{gcn_forward.7} parent=1 // pred_fallthru
      _
    %s50 = smul.u32 0, 128
    %s51 = sshra.s32 %s50, 3
    %s52 = sand.u32 %s50, 7
    %s53 = smul.addr %s51, 4
    %s54 = scalar_lea.vmem %s1, %s53
    %v55 = vld [vmem:[%s54] sm:$0xf]
    %v56 = vld [vmem:[%s54 + $0x4] sm:$0xf]
    %v57 = vld [vmem:[%s54 + $0x8] sm:$0xf]
    %v58 = vld [vmem:[%s54 + $0xc] sm:$0xf]
    %v59 = vld [vmem:[%s54 + $0x10] sm:$0xf]
    %v60 = vld [vmem:[%s54 + $0x14] sm:$0xf]
    %v61 = vld [vmem:[%s54 + $0x18] sm:$0xf]
    %v62 = vld [vmem:[%s54 + $0x1c] sm:$0xf]
    %v63 = vld [vmem:[%s54 + $0x20] sm:$0xf]
    %v64 = vld [vmem:[%s54 + $0x24] sm:$0xf]
    %v65 = vld [vmem:[%s54 + $0x28] sm:$0xf]
    %v66 = vld [vmem:[%s54 + $0x2c] sm:$0xf]
    %v67 = vld [vmem:[%s54 + $0x30] sm:$0xf]
    %v68 = vld [vmem:[%s54 + $0x34] sm:$0xf]
    %v69 = vld [vmem:[%s54 + $0x38] sm:$0xf]
    %v70 = vld [vmem:[%s54 + $0x3c] sm:$0xf]
    %v71 = vld [vmem:[%s3] sm:$0xff]
    %v72 = vld [vmem:[%s3 + $0x8] sm:$0xff]
    %v73 = vld [vmem:[%s3 + $0x10] sm:$0xff]
    %v74 = vld [vmem:[%s3 + $0x18] sm:$0xff]
    %v75 = vld [vmem:[%s3 + $0x20] sm:$0xff]
    %v76 = vld [vmem:[%s3 + $0x28] sm:$0xff]
    %v77 = vld [vmem:[%s3 + $0x30] sm:$0xff]
    %v78 = vld [vmem:[%s3 + $0x38] sm:$0xff]
    %v79 = vld [vmem:[%s3 + $0x40] sm:$0xff]
    %v80 = vld [vmem:[%s3 + $0x48] sm:$0xff]
    %v81 = vld [vmem:[%s3 + $0x50] sm:$0xff]
    %v82 = vld [vmem:[%s3 + $0x58] sm:$0xff]
    %v83 = vld [vmem:[%s3 + $0x60] sm:$0xff]
    %v84 = vld [vmem:[%s3 + $0x68] sm:$0xff]
    %v85 = vld [vmem:[%s3 + $0x70] sm:$0xff]
    %v86 = vld [vmem:[%s3 + $0x78] sm:$0xff]
    %v87 = vld [vmem:[#allocation2] sm:$0xf]
    %v88 = vld [vmem:[#allocation2 + $0x4] sm:$0xf]
    %v89 = vld [vmem:[#allocation2 + $0x8] sm:$0xf]
    %v90 = vld [vmem:[#allocation2 + $0xc] sm:$0xf]
    %v91 = vld [vmem:[#allocation2 + $0x10] sm:$0xf]
    %v92 = vld [vmem:[#allocation2 + $0x14] sm:$0xf]
    %v93 = vld [vmem:[#allocation2 + $0x18] sm:$0xf]
    %v94 = vld [vmem:[#allocation2 + $0x1c] sm:$0xf]
    %v95 = vld [vmem:[#allocation2 + $0x20] sm:$0xf]
    %v96 = vld [vmem:[#allocation2 + $0x24] sm:$0xf]
    %v97 = vld [vmem:[#allocation2 + $0x28] sm:$0xf]
    %v98 = vld [vmem:[#allocation2 + $0x2c] sm:$0xf]
    %v99 = vld [vmem:[#allocation2 + $0x30] sm:$0xf]
    %v100 = vld [vmem:[#allocation2 + $0x34] sm:$0xf]
    %v101 = vld [vmem:[#allocation2 + $0x38] sm:$0xf]
    %v102 = vld [vmem:[#allocation2 + $0x3c] sm:$0xf]
    %v119 = vunpack.c.l.b16 %v87
    %v120 = vunpack.c.l.b16 %v88
    %v121 = vunpack.c.l.b16 %v89
    %v122 = vunpack.c.l.b16 %v90
    %v123 = vunpack.c.l.b16 %v91
    %v124 = vunpack.c.l.b16 %v92
    %v125 = vunpack.c.l.b16 %v93
    %v126 = vunpack.c.l.b16 %v94
    %v127 = vunpack.c.l.b16 %v95
    %v128 = vunpack.c.l.b16 %v96
    %v129 = vunpack.c.l.b16 %v97
    %v130 = vunpack.c.l.b16 %v98
    %v131 = vunpack.c.l.b16 %v99
    %v132 = vunpack.c.l.b16 %v100
    %v133 = vunpack.c.l.b16 %v101
    %v134 = vunpack.c.l.b16 %v102
    %v135 = vpack.c.b16 %v120, %v119
    %v136 = vpack.c.b16 %v122, %v121
    %v137 = vpack.c.b16 %v124, %v123
    %v138 = vpack.c.b16 %v126, %v125
    %v139 = vpack.c.b16 %v128, %v127
    %v140 = vpack.c.b16 %v130, %v129
    %v141 = vpack.c.b16 %v132, %v131
    %v142 = vpack.c.b16 %v134, %v133
    %v167 = vunpack.c.l.b16 %v55
    %v168 = vunpack.c.l.b16 %v56
    %v169 = vunpack.c.l.b16 %v57
    %v170 = vunpack.c.l.b16 %v58
    %v171 = vunpack.c.l.b16 %v59
    %v172 = vunpack.c.l.b16 %v60
    %v173 = vunpack.c.l.b16 %v61
    %v174 = vunpack.c.l.b16 %v62
    %v175 = vunpack.c.l.b16 %v63
    %v176 = vunpack.c.l.b16 %v64
    %v177 = vunpack.c.l.b16 %v65
    %v178 = vunpack.c.l.b16 %v66
    %v179 = vunpack.c.l.b16 %v67
    %v180 = vunpack.c.l.b16 %v68
    %v181 = vunpack.c.l.b16 %v69
    %v182 = vunpack.c.l.b16 %v70
    %v183 = vpack.c.b16 %v168, %v167
    %v184 = vpack.c.b16 %v170, %v169
    %v185 = vpack.c.b16 %v172, %v171
    %v186 = vpack.c.b16 %v174, %v173
    %v187 = vpack.c.b16 %v176, %v175
    %v188 = vpack.c.b16 %v178, %v177
    %v189 = vpack.c.b16 %v180, %v179
    %v190 = vpack.c.b16 %v182, %v181
    %199 = vmatpush.bf16.msra.mxu0 %v190
    %200 = vmatpush.bf16.msra.mxu0 %v189
    %201 = vmatpush.bf16.msra.mxu0 %v188
    %202 = vmatpush.bf16.msra.mxu0 %v187
    %203 = vmatpush.bf16.msra.mxu0 %v186
    %204 = vmatpush.bf16.msra.mxu0 %v185
    %205 = vmatpush.bf16.msra.mxu0 %v184
    %206 = vmatpush.bf16.msra.mxu0 %v183
    %207 = vmatmul.bf16.gmra.mxu0 %v135
    %v208 = vpop.f32.mrf.mxu0
    %v209 = vadd.f32 0.0, %v208
    %v210 = vpop.f32.mrf.mxu0
    %v211 = vadd.f32 0.0, %v210
    %212 = vmatmul.bf16.gmra.mxu0 %v136
    %v213 = vpop.f32.mrf.mxu0
    %v214 = vadd.f32 0.0, %v213
    %v215 = vpop.f32.mrf.mxu0
    %v216 = vadd.f32 0.0, %v215
    %217 = vmatmul.bf16.gmra.mxu0 %v137
    %v218 = vpop.f32.mrf.mxu0
    %v219 = vadd.f32 0.0, %v218
    %v220 = vpop.f32.mrf.mxu0
    %v221 = vadd.f32 0.0, %v220
    %222 = vmatmul.bf16.gmra.mxu0 %v138
    %v223 = vpop.f32.mrf.mxu0
    %v224 = vadd.f32 0.0, %v223
    %v225 = vpop.f32.mrf.mxu0
    %v226 = vadd.f32 0.0, %v225
    %227 = vmatmul.bf16.gmra.mxu0 %v139
    %v228 = vpop.f32.mrf.mxu0
    %v229 = vadd.f32 0.0, %v228
    %v230 = vpop.f32.mrf.mxu0
    %v231 = vadd.f32 0.0, %v230
    %232 = vmatmul.bf16.gmra.mxu0 %v140
    %v233 = vpop.f32.mrf.mxu0
    %v234 = vadd.f32 0.0, %v233
    %v235 = vpop.f32.mrf.mxu0
    %v236 = vadd.f32 0.0, %v235
    %237 = vmatmul.bf16.gmra.mxu0 %v141
    %v238 = vpop.f32.mrf.mxu0
    %v239 = vadd.f32 0.0, %v238
    %v240 = vpop.f32.mrf.mxu0
    %v241 = vadd.f32 0.0, %v240
    %242 = vmatmul.bf16.gmra.mxu0 %v142
    %v243 = vpop.f32.mrf.mxu0
    %v244 = vadd.f32 0.0, %v243
    %v245 = vpop.f32.mrf.mxu0
    %v246 = vadd.f32 0.0, %v245
    %247 = vdwg.mxu0
    %v248 = vadd.f32 %v71, %v209
    %v249 = vadd.f32 %v72, %v211
    %v250 = vadd.f32 %v73, %v214
    %v251 = vadd.f32 %v74, %v216
    %v252 = vadd.f32 %v75, %v219
    %v253 = vadd.f32 %v76, %v221
    %v254 = vadd.f32 %v77, %v224
    %v255 = vadd.f32 %v78, %v226
    %v256 = vadd.f32 %v79, %v229
    %v257 = vadd.f32 %v80, %v231
    %v258 = vadd.f32 %v81, %v234
    %v259 = vadd.f32 %v82, %v236
    %v260 = vadd.f32 %v83, %v239
    %v261 = vadd.f32 %v84, %v241
    %v262 = vadd.f32 %v85, %v244
    %v263 = vadd.f32 %v86, %v246
    %264 = vst [vmem:[%s3] sm:$0xff] %v248
    %265 = vst [vmem:[%s3 + $0x8] sm:$0xff] %v249
    %266 = vst [vmem:[%s3 + $0x10] sm:$0xff] %v250
    %267 = vst [vmem:[%s3 + $0x18] sm:$0xff] %v251
    %268 = vst [vmem:[%s3 + $0x20] sm:$0xff] %v252
    %269 = vst [vmem:[%s3 + $0x28] sm:$0xff] %v253
    %270 = vst [vmem:[%s3 + $0x30] sm:$0xff] %v254
    %271 = vst [vmem:[%s3 + $0x38] sm:$0xff] %v255
    %272 = vst [vmem:[%s3 + $0x40] sm:$0xff] %v256
    %273 = vst [vmem:[%s3 + $0x48] sm:$0xff] %v257
    %274 = vst [vmem:[%s3 + $0x50] sm:$0xff] %v258
    %275 = vst [vmem:[%s3 + $0x58] sm:$0xff] %v259
    %276 = vst [vmem:[%s3 + $0x60] sm:$0xff] %v260
    %277 = vst [vmem:[%s3 + $0x68] sm:$0xff] %v261
    %278 = vst [vmem:[%s3 + $0x70] sm:$0xff] %v262
    %279 = vst [vmem:[%s3 + $0x78] sm:$0xff] %v263
    // Predicated region
    $region22: #{gcn_forward.7} parent=1 // pred_check
      %p280 = pneg %p30
    $region23: #{gcn_forward.7} parent=1 // pred_check_branch
      %282 = sbr.rel (%p280) target = $region25
    $region24: #{gcn_forward.7} parent=1 // pred_region
      %v283 = vld [vmem:[%s3] sm:$0xff]
      %v284 = vld [vmem:[%s3 + $0x8] sm:$0xff]
      %v285 = vld [vmem:[%s3 + $0x10] sm:$0xff]
      %v286 = vld [vmem:[%s3 + $0x18] sm:$0xff]
      %v287 = vld [vmem:[%s3 + $0x20] sm:$0xff]
      %v288 = vld [vmem:[%s3 + $0x28] sm:$0xff]
      %v289 = vld [vmem:[%s3 + $0x30] sm:$0xff]
      %v290 = vld [vmem:[%s3 + $0x38] sm:$0xff]
      %v291 = vld [vmem:[%s3 + $0x40] sm:$0xff]
      %v292 = vld [vmem:[%s3 + $0x48] sm:$0xff]
      %v293 = vld [vmem:[%s3 + $0x50] sm:$0xff]
      %v294 = vld [vmem:[%s3 + $0x58] sm:$0xff]
      %v295 = vld [vmem:[%s3 + $0x60] sm:$0xff]
      %v296 = vld [vmem:[%s3 + $0x68] sm:$0xff]
      %v297 = vld [vmem:[%s3 + $0x70] sm:$0xff]
      %v298 = vld [vmem:[%s3 + $0x78] sm:$0xff]
      %v299 = vld [vmem:[%s2] sm:$0x1]
      %v301 = vperm.slane %v299, 0
      %v303 = vadd.f32 %v283, %v301
      %v304 = vadd.f32 %v284, %v301
      %v305 = vadd.f32 %v285, %v301
      %v306 = vadd.f32 %v286, %v301
      %v307 = vadd.f32 %v287, %v301
      %v308 = vadd.f32 %v288, %v301
      %v309 = vadd.f32 %v289, %v301
      %v310 = vadd.f32 %v290, %v301
      %v311 = vadd.f32 %v291, %v301
      %v312 = vadd.f32 %v292, %v301
      %v313 = vadd.f32 %v293, %v301
      %v314 = vadd.f32 %v294, %v301
      %v315 = vadd.f32 %v295, %v301
      %v316 = vadd.f32 %v296, %v301
      %v317 = vadd.f32 %v297, %v301
      %v318 = vadd.f32 %v298, %v301
      %319 = vst [vmem:[%s3] sm:$0xff] %v303
      %320 = vst [vmem:[%s3 + $0x8] sm:$0xff] %v304
      %321 = vst [vmem:[%s3 + $0x10] sm:$0xff] %v305
      %322 = vst [vmem:[%s3 + $0x18] sm:$0xff] %v306
      %323 = vst [vmem:[%s3 + $0x20] sm:$0xff] %v307
      %324 = vst [vmem:[%s3 + $0x28] sm:$0xff] %v308
      %325 = vst [vmem:[%s3 + $0x30] sm:$0xff] %v309
      %326 = vst [vmem:[%s3 + $0x38] sm:$0xff] %v310
      %327 = vst [vmem:[%s3 + $0x40] sm:$0xff] %v311
      %328 = vst [vmem:[%s3 + $0x48] sm:$0xff] %v312
      %329 = vst [vmem:[%s3 + $0x50] sm:$0xff] %v313
      %330 = vst [vmem:[%s3 + $0x58] sm:$0xff] %v314
      %331 = vst [vmem:[%s3 + $0x60] sm:$0xff] %v315
      %332 = vst [vmem:[%s3 + $0x68] sm:$0xff] %v316
      %333 = vst [vmem:[%s3 + $0x70] sm:$0xff] %v317
      %334 = vst [vmem:[%s3 + $0x78] sm:$0xff] %v318
    $region25: #{gcn_forward.7} parent=1 // pred_fallthru
      _
    // Predicated region
    $region26: #{gcn_forward.7} parent=1 // pred_check
      _
    $region27: #{gcn_forward.7} parent=1 // pred_check_branch
      %336 = sbr.rel (0) target = $region29
    $region28: #{gcn_forward.7} parent=1 // pred_region
      _
    $region29: #{gcn_forward.7} parent=1 // pred_fallthru
      _
    // Predicated region
    $region30: #{gcn_forward.7} parent=1 // pred_check
      _
    $region31: #{gcn_forward.7} parent=1 // pred_check_branch
      %338 = sbr.rel (0) target = $region33
    $region32: #{gcn_forward.7} parent=1 // pred_region
      _
    $region33: #{gcn_forward.7} parent=1 // pred_fallthru
      _
    %339 = vsyncpa [#allocation3], 1

// kernel: gcn_forward.5
$region0: #{gcn_forward.5}
  #allocation0 [shape = 'u32[]', space=smem, size = 0x4, offset = 0x4, fixed_abs, tag = 'smem constant byte address 0x4 - core index']
  #allocation1 [shape = 'u32[72,128]{1,0:T(1,128)}', space=vmem, size = 0x9000, scoped, tag = 'internal scratch']
  #allocation2 [shape = 'f32[128,128]{1,0:T(8,128)}', space=vmem, size = 0x10000, scoped, tag = 'scratch operand']
  %s0 = inlined_call_operand.hbm [shape: bf16[128,128], index: 0, kind: input, shape index: {}]
  %s1 = inlined_call_operand.vmem [shape: bf16[128,128], index: 1, kind: input, shape index: {}]
  %s2 = inlined_call_operand.vmem [shape: f32[1,128], index: 2, kind: input, shape index: {}]
  %s3 = inlined_call_operand.vmem [shape: bf16[128,128], index: 3, kind: output, shape index: {}]
  %s4 = sld [smem:[#allocation0]]
  $region34: #{gcn_forward.5} parent=0
    _
  %s6 = ssub.s32 1, %s4
  %s7 = scalar_select 0, %s6, %s4
  $region1: #{gcn_forward.5} parent=0
    #allocation3 [shape = 'u8[32768]{0}', space=vmem, size = 0x8000, scoped, tag = 'input window, operand 0, single buffered']
    #allocation4 [shape = 's32[1]{0}', space=sflag, size = 0x4, scoped, tag = 'scoped memory for gcn_forward.5']
    %8 = vsyncpa [#allocation4], 0
    // Predicated region
    $region2: #{gcn_forward.5} parent=1 // pred_check
      _
    $region3: #{gcn_forward.5} parent=1 // pred_check_branch
      %10 = sbr.rel (0) target = $region5
    $region4: #{gcn_forward.5} parent=1 // pred_region
      %12 = vsyncadd [#allocation4], 0
      %s13 = sshll.u32 %s0, 4
      %s14 = int_to_ptr.hbm [resolvable:$true] %s13
      %s15 = sshll.u32 [#allocation3], 4
      %s16 = int_to_ptr.vmem [resolvable:$true] %s15
      %21 = dma.hbm_to_vmem [thread:$0]  %s14, 1024, %s16, [#allocation4], 64, 64, 4
    $region5: #{gcn_forward.5} parent=1 // pred_fallthru
      _
    // Predicated region
    $region6: #{gcn_forward.5} parent=1 // pred_check
      _
    $region7: #{gcn_forward.5} parent=1 // pred_check_branch
      %23 = sbr.rel (0) target = $region9
    $region8: #{gcn_forward.5} parent=1 // pred_region
      _
    $region9: #{gcn_forward.5} parent=1 // pred_fallthru
      _
    // Predicated region
    $region10: #{gcn_forward.5} parent=1 // pred_check
      _
    $region11: #{gcn_forward.5} parent=1 // pred_check_branch
      %25 = sbr.rel (0) target = $region13
    $region12: #{gcn_forward.5} parent=1 // pred_region
      _
    $region13: #{gcn_forward.5} parent=1 // pred_fallthru
      _
    // Predicated region
    $region14: #{gcn_forward.5} parent=1 // pred_check
      _
    $region15: #{gcn_forward.5} parent=1 // pred_check_branch
      %27 = sbr.rel (0) target = $region17
    $region16: #{gcn_forward.5} parent=1 // pred_region
      %29 = dma.done [#allocation4], 1024
    $region17: #{gcn_forward.5} parent=1 // pred_fallthru
      _
    %p30 = scmp.eq.s32.totalorder 0, 0
    // Predicated region
    $region18: #{gcn_forward.5} parent=1 // pred_check
      %p31 = pneg %p30
    $region19: #{gcn_forward.5} parent=1 // pred_check_branch
      %33 = sbr.rel (%p31) target = $region21
    $region20: #{gcn_forward.5} parent=1 // pred_region
      %34 = vst [vmem:[#allocation2] sm:$0xff] 0.0
      %35 = vst [vmem:[#allocation2 + $0x8] sm:$0xff] 0.0
      %36 = vst [vmem:[#allocation2 + $0x10] sm:$0xff] 0.0
      %37 = vst [vmem:[#allocation2 + $0x18] sm:$0xff] 0.0
      %38 = vst [vmem:[#allocation2 + $0x20] sm:$0xff] 0.0
      %39 = vst [vmem:[#allocation2 + $0x28] sm:$0xff] 0.0
      %40 = vst [vmem:[#allocation2 + $0x30] sm:$0xff] 0.0
      %41 = vst [vmem:[#allocation2 + $0x38] sm:$0xff] 0.0
      %42 = vst [vmem:[#allocation2 + $0x40] sm:$0xff] 0.0
      %43 = vst [vmem:[#allocation2 + $0x48] sm:$0xff] 0.0
      %44 = vst [vmem:[#allocation2 + $0x50] sm:$0xff] 0.0
      %45 = vst [vmem:[#allocation2 + $0x58] sm:$0xff] 0.0
      %46 = vst [vmem:[#allocation2 + $0x60] sm:$0xff] 0.0
      %47 = vst [vmem:[#allocation2 + $0x68] sm:$0xff] 0.0
      %48 = vst [vmem:[#allocation2 + $0x70] sm:$0xff] 0.0
      %49 = vst [vmem:[#allocation2 + $0x78] sm:$0xff] 0.0
    $region21: #{gcn_forward.5} parent=1 // pred_fallthru
      _
    %s50 = smul.u32 0, 128
    %s51 = sshra.s32 %s50, 3
    %s52 = sand.u32 %s50, 7
    %s53 = smul.addr %s51, 4
    %s54 = scalar_lea.vmem %s1, %s53
    %v55 = vld [vmem:[%s54] sm:$0xf]
    %v56 = vld [vmem:[%s54 + $0x4] sm:$0xf]
    %v57 = vld [vmem:[%s54 + $0x8] sm:$0xf]
    %v58 = vld [vmem:[%s54 + $0xc] sm:$0xf]
    %v59 = vld [vmem:[%s54 + $0x10] sm:$0xf]
    %v60 = vld [vmem:[%s54 + $0x14] sm:$0xf]
    %v61 = vld [vmem:[%s54 + $0x18] sm:$0xf]
    %v62 = vld [vmem:[%s54 + $0x1c] sm:$0xf]
    %v63 = vld [vmem:[%s54 + $0x20] sm:$0xf]
    %v64 = vld [vmem:[%s54 + $0x24] sm:$0xf]
    %v65 = vld [vmem:[%s54 + $0x28] sm:$0xf]
    %v66 = vld [vmem:[%s54 + $0x2c] sm:$0xf]
    %v67 = vld [vmem:[%s54 + $0x30] sm:$0xf]
    %v68 = vld [vmem:[%s54 + $0x34] sm:$0xf]
    %v69 = vld [vmem:[%s54 + $0x38] sm:$0xf]
    %v70 = vld [vmem:[%s54 + $0x3c] sm:$0xf]
    %v71 = vld [vmem:[#allocation2] sm:$0xff]
    %v72 = vld [vmem:[#allocation2 + $0x8] sm:$0xff]
    %v73 = vld [vmem:[#allocation2 + $0x10] sm:$0xff]
    %v74 = vld [vmem:[#allocation2 + $0x18] sm:$0xff]
    %v75 = vld [vmem:[#allocation2 + $0x20] sm:$0xff]
    %v76 = vld [vmem:[#allocation2 + $0x28] sm:$0xff]
    %v77 = vld [vmem:[#allocation2 + $0x30] sm:$0xff]
    %v78 = vld [vmem:[#allocation2 + $0x38] sm:$0xff]
    %v79 = vld [vmem:[#allocation2 + $0x40] sm:$0xff]
    %v80 = vld [vmem:[#allocation2 + $0x48] sm:$0xff]
    %v81 = vld [vmem:[#allocation2 + $0x50] sm:$0xff]
    %v82 = vld [vmem:[#allocation2 + $0x58] sm:$0xff]
    %v83 = vld [vmem:[#allocation2 + $0x60] sm:$0xff]
    %v84 = vld [vmem:[#allocation2 + $0x68] sm:$0xff]
    %v85 = vld [vmem:[#allocation2 + $0x70] sm:$0xff]
    %v86 = vld [vmem:[#allocation2 + $0x78] sm:$0xff]
    %v87 = vld [vmem:[#allocation3] sm:$0xf]
    %v88 = vld [vmem:[#allocation3 + $0x4] sm:$0xf]
    %v89 = vld [vmem:[#allocation3 + $0x8] sm:$0xf]
    %v90 = vld [vmem:[#allocation3 + $0xc] sm:$0xf]
    %v91 = vld [vmem:[#allocation3 + $0x10] sm:$0xf]
    %v92 = vld [vmem:[#allocation3 + $0x14] sm:$0xf]
    %v93 = vld [vmem:[#allocation3 + $0x18] sm:$0xf]
    %v94 = vld [vmem:[#allocation3 + $0x1c] sm:$0xf]
    %v95 = vld [vmem:[#allocation3 + $0x20] sm:$0xf]
    %v96 = vld [vmem:[#allocation3 + $0x24] sm:$0xf]
    %v97 = vld [vmem:[#allocation3 + $0x28] sm:$0xf]
    %v98 = vld [vmem:[#allocation3 + $0x2c] sm:$0xf]
    %v99 = vld [vmem:[#allocation3 + $0x30] sm:$0xf]
    %v100 = vld [vmem:[#allocation3 + $0x34] sm:$0xf]
    %v101 = vld [vmem:[#allocation3 + $0x38] sm:$0xf]
    %v102 = vld [vmem:[#allocation3 + $0x3c] sm:$0xf]
    %v119 = vunpack.c.l.b16 %v87
    %v120 = vunpack.c.l.b16 %v88
    %v121 = vunpack.c.l.b16 %v89
    %v122 = vunpack.c.l.b16 %v90
    %v123 = vunpack.c.l.b16 %v91
    %v124 = vunpack.c.l.b16 %v92
    %v125 = vunpack.c.l.b16 %v93
    %v126 = vunpack.c.l.b16 %v94
    %v127 = vunpack.c.l.b16 %v95
    %v128 = vunpack.c.l.b16 %v96
    %v129 = vunpack.c.l.b16 %v97
    %v130 = vunpack.c.l.b16 %v98
    %v131 = vunpack.c.l.b16 %v99
    %v132 = vunpack.c.l.b16 %v100
    %v133 = vunpack.c.l.b16 %v101
    %v134 = vunpack.c.l.b16 %v102
    %v135 = vpack.c.b16 %v120, %v119
    %v136 = vpack.c.b16 %v122, %v121
    %v137 = vpack.c.b16 %v124, %v123
    %v138 = vpack.c.b16 %v126, %v125
    %v139 = vpack.c.b16 %v128, %v127
    %v140 = vpack.c.b16 %v130, %v129
    %v141 = vpack.c.b16 %v132, %v131
    %v142 = vpack.c.b16 %v134, %v133
    %v167 = vunpack.c.l.b16 %v55
    %v168 = vunpack.c.l.b16 %v56
    %v169 = vunpack.c.l.b16 %v57
    %v170 = vunpack.c.l.b16 %v58
    %v171 = vunpack.c.l.b16 %v59
    %v172 = vunpack.c.l.b16 %v60
    %v173 = vunpack.c.l.b16 %v61
    %v174 = vunpack.c.l.b16 %v62
    %v175 = vunpack.c.l.b16 %v63
    %v176 = vunpack.c.l.b16 %v64
    %v177 = vunpack.c.l.b16 %v65
    %v178 = vunpack.c.l.b16 %v66
    %v179 = vunpack.c.l.b16 %v67
    %v180 = vunpack.c.l.b16 %v68
    %v181 = vunpack.c.l.b16 %v69
    %v182 = vunpack.c.l.b16 %v70
    %v183 = vpack.c.b16 %v168, %v167
    %v184 = vpack.c.b16 %v170, %v169
    %v185 = vpack.c.b16 %v172, %v171
    %v186 = vpack.c.b16 %v174, %v173
    %v187 = vpack.c.b16 %v176, %v175
    %v188 = vpack.c.b16 %v178, %v177
    %v189 = vpack.c.b16 %v180, %v179
    %v190 = vpack.c.b16 %v182, %v181
    %199 = vmatpush.bf16.msra.mxu0 %v190
    %200 = vmatpush.bf16.msra.mxu0 %v189
    %201 = vmatpush.bf16.msra.mxu0 %v188
    %202 = vmatpush.bf16.msra.mxu0 %v187
    %203 = vmatpush.bf16.msra.mxu0 %v186
    %204 = vmatpush.bf16.msra.mxu0 %v185
    %205 = vmatpush.bf16.msra.mxu0 %v184
    %206 = vmatpush.bf16.msra.mxu0 %v183
    %207 = vmatmul.bf16.gmra.mxu0 %v135
    %v208 = vpop.f32.mrf.mxu0
    %v209 = vadd.f32 0.0, %v208
    %v210 = vpop.f32.mrf.mxu0
    %v211 = vadd.f32 0.0, %v210
    %212 = vmatmul.bf16.gmra.mxu0 %v136
    %v213 = vpop.f32.mrf.mxu0
    %v214 = vadd.f32 0.0, %v213
    %v215 = vpop.f32.mrf.mxu0
    %v216 = vadd.f32 0.0, %v215
    %217 = vmatmul.bf16.gmra.mxu0 %v137
    %v218 = vpop.f32.mrf.mxu0
    %v219 = vadd.f32 0.0, %v218
    %v220 = vpop.f32.mrf.mxu0
    %v221 = vadd.f32 0.0, %v220
    %222 = vmatmul.bf16.gmra.mxu0 %v138
    %v223 = vpop.f32.mrf.mxu0
    %v224 = vadd.f32 0.0, %v223
    %v225 = vpop.f32.mrf.mxu0
    %v226 = vadd.f32 0.0, %v225
    %227 = vmatmul.bf16.gmra.mxu0 %v139
    %v228 = vpop.f32.mrf.mxu0
    %v229 = vadd.f32 0.0, %v228
    %v230 = vpop.f32.mrf.mxu0
    %v231 = vadd.f32 0.0, %v230
    %232 = vmatmul.bf16.gmra.mxu0 %v140
    %v233 = vpop.f32.mrf.mxu0
    %v234 = vadd.f32 0.0, %v233
    %v235 = vpop.f32.mrf.mxu0
    %v236 = vadd.f32 0.0, %v235
    %237 = vmatmul.bf16.gmra.mxu0 %v141
    %v238 = vpop.f32.mrf.mxu0
    %v239 = vadd.f32 0.0, %v238
    %v240 = vpop.f32.mrf.mxu0
    %v241 = vadd.f32 0.0, %v240
    %242 = vmatmul.bf16.gmra.mxu0 %v142
    %v243 = vpop.f32.mrf.mxu0
    %v244 = vadd.f32 0.0, %v243
    %v245 = vpop.f32.mrf.mxu0
    %v246 = vadd.f32 0.0, %v245
    %247 = vdwg.mxu0
    %v248 = vadd.f32 %v71, %v209
    %v249 = vadd.f32 %v72, %v211
    %v250 = vadd.f32 %v73, %v214
    %v251 = vadd.f32 %v74, %v216
    %v252 = vadd.f32 %v75, %v219
    %v253 = vadd.f32 %v76, %v221
    %v254 = vadd.f32 %v77, %v224
    %v255 = vadd.f32 %v78, %v226
    %v256 = vadd.f32 %v79, %v229
    %v257 = vadd.f32 %v80, %v231
    %v258 = vadd.f32 %v81, %v234
    %v259 = vadd.f32 %v82, %v236
    %v260 = vadd.f32 %v83, %v239
    %v261 = vadd.f32 %v84, %v241
    %v262 = vadd.f32 %v85, %v244
    %v263 = vadd.f32 %v86, %v246
    %264 = vst [vmem:[#allocation2] sm:$0xff] %v248
    %265 = vst [vmem:[#allocation2 + $0x8] sm:$0xff] %v249
    %266 = vst [vmem:[#allocation2 + $0x10] sm:$0xff] %v250
    %267 = vst [vmem:[#allocation2 + $0x18] sm:$0xff] %v251
    %268 = vst [vmem:[#allocation2 + $0x20] sm:$0xff] %v252
    %269 = vst [vmem:[#allocation2 + $0x28] sm:$0xff] %v253
    %270 = vst [vmem:[#allocation2 + $0x30] sm:$0xff] %v254
    %271 = vst [vmem:[#allocation2 + $0x38] sm:$0xff] %v255
    %272 = vst [vmem:[#allocation2 + $0x40] sm:$0xff] %v256
    %273 = vst [vmem:[#allocation2 + $0x48] sm:$0xff] %v257
    %274 = vst [vmem:[#allocation2 + $0x50] sm:$0xff] %v258
    %275 = vst [vmem:[#allocation2 + $0x58] sm:$0xff] %v259
    %276 = vst [vmem:[#allocation2 + $0x60] sm:$0xff] %v260
    %277 = vst [vmem:[#allocation2 + $0x68] sm:$0xff] %v261
    %278 = vst [vmem:[#allocation2 + $0x70] sm:$0xff] %v262
    %279 = vst [vmem:[#allocation2 + $0x78] sm:$0xff] %v263
    // Predicated region
    $region22: #{gcn_forward.5} parent=1 // pred_check
      %p280 = pneg %p30
    $region23: #{gcn_forward.5} parent=1 // pred_check_branch
      %282 = sbr.rel (%p280) target = $region25
    $region24: #{gcn_forward.5} parent=1 // pred_region
      %v283 = vld [vmem:[#allocation2] sm:$0xff]
      %v284 = vld [vmem:[#allocation2 + $0x8] sm:$0xff]
      %v285 = vld [vmem:[#allocation2 + $0x10] sm:$0xff]
      %v286 = vld [vmem:[#allocation2 + $0x18] sm:$0xff]
      %v287 = vld [vmem:[#allocation2 + $0x20] sm:$0xff]
      %v288 = vld [vmem:[#allocation2 + $0x28] sm:$0xff]
      %v289 = vld [vmem:[#allocation2 + $0x30] sm:$0xff]
      %v290 = vld [vmem:[#allocation2 + $0x38] sm:$0xff]
      %v291 = vld [vmem:[#allocation2 + $0x40] sm:$0xff]
      %v292 = vld [vmem:[#allocation2 + $0x48] sm:$0xff]
      %v293 = vld [vmem:[#allocation2 + $0x50] sm:$0xff]
      %v294 = vld [vmem:[#allocation2 + $0x58] sm:$0xff]
      %v295 = vld [vmem:[#allocation2 + $0x60] sm:$0xff]
      %v296 = vld [vmem:[#allocation2 + $0x68] sm:$0xff]
      %v297 = vld [vmem:[#allocation2 + $0x70] sm:$0xff]
      %v298 = vld [vmem:[#allocation2 + $0x78] sm:$0xff]
      %v299 = vld [vmem:[%s2] sm:$0x1]
      %v301 = vperm.slane %v299, 0
      %v303 = vadd.f32 %v283, %v301
      %v304 = vadd.f32 %v284, %v301
      %v305 = vadd.f32 %v285, %v301
      %v306 = vadd.f32 %v286, %v301
      %v307 = vadd.f32 %v287, %v301
      %v308 = vadd.f32 %v288, %v301
      %v309 = vadd.f32 %v289, %v301
      %v310 = vadd.f32 %v290, %v301
      %v311 = vadd.f32 %v291, %v301
      %v312 = vadd.f32 %v292, %v301
      %v313 = vadd.f32 %v293, %v301
      %v314 = vadd.f32 %v294, %v301
      %v315 = vadd.f32 %v295, %v301
      %v316 = vadd.f32 %v296, %v301
      %v317 = vadd.f32 %v297, %v301
      %v318 = vadd.f32 %v298, %v301
      %v319 = vmax.f32 %v303, 0.0
      %v320 = vmax.f32 %v304, 0.0
      %v321 = vmax.f32 %v305, 0.0
      %v322 = vmax.f32 %v306, 0.0
      %v323 = vmax.f32 %v307, 0.0
      %v324 = vmax.f32 %v308, 0.0
      %v325 = vmax.f32 %v309, 0.0
      %v326 = vmax.f32 %v310, 0.0
      %v327 = vmax.f32 %v311, 0.0
      %v328 = vmax.f32 %v312, 0.0
      %v329 = vmax.f32 %v313, 0.0
      %v330 = vmax.f32 %v314, 0.0
      %v331 = vmax.f32 %v315, 0.0
      %v332 = vmax.f32 %v316, 0.0
      %v333 = vmax.f32 %v317, 0.0
      %v334 = vmax.f32 %v318, 0.0
      %v335 = vpack.c.bf16 %v319, %v319
      %v336 = vpack.c.bf16 %v320, %v320
      %v337 = vpack.c.bf16 %v321, %v321
      %v338 = vpack.c.bf16 %v322, %v322
      %v339 = vpack.c.bf16 %v323, %v323
      %v340 = vpack.c.bf16 %v324, %v324
      %v341 = vpack.c.bf16 %v325, %v325
      %v342 = vpack.c.bf16 %v326, %v326
      %v343 = vpack.c.bf16 %v327, %v327
      %v344 = vpack.c.bf16 %v328, %v328
      %v345 = vpack.c.bf16 %v329, %v329
      %v346 = vpack.c.bf16 %v330, %v330
      %v347 = vpack.c.bf16 %v331, %v331
      %v348 = vpack.c.bf16 %v332, %v332
      %v349 = vpack.c.bf16 %v333, %v333
      %v350 = vpack.c.bf16 %v334, %v334
      %351 = vst [vmem:[%s3] sm:$0xf] %v335
      %352 = vst [vmem:[%s3 + $0x4] sm:$0xf] %v336
      %353 = vst [vmem:[%s3 + $0x8] sm:$0xf] %v337
      %354 = vst [vmem:[%s3 + $0xc] sm:$0xf] %v338
      %355 = vst [vmem:[%s3 + $0x10] sm:$0xf] %v339
      %356 = vst [vmem:[%s3 + $0x14] sm:$0xf] %v340
      %357 = vst [vmem:[%s3 + $0x18] sm:$0xf] %v341
      %358 = vst [vmem:[%s3 + $0x1c] sm:$0xf] %v342
      %359 = vst [vmem:[%s3 + $0x20] sm:$0xf] %v343
      %360 = vst [vmem:[%s3 + $0x24] sm:$0xf] %v344
      %361 = vst [vmem:[%s3 + $0x28] sm:$0xf] %v345
      %362 = vst [vmem:[%s3 + $0x2c] sm:$0xf] %v346
      %363 = vst [vmem:[%s3 + $0x30] sm:$0xf] %v347
      %364 = vst [vmem:[%s3 + $0x34] sm:$0xf] %v348
      %365 = vst [vmem:[%s3 + $0x38] sm:$0xf] %v349
      %366 = vst [vmem:[%s3 + $0x3c] sm:$0xf] %v350
    $region25: #{gcn_forward.5} parent=1 // pred_fallthru
      _
    // Predicated region
    $region26: #{gcn_forward.5} parent=1 // pred_check
      _
    $region27: #{gcn_forward.5} parent=1 // pred_check_branch
      %368 = sbr.rel (0) target = $region29
    $region28: #{gcn_forward.5} parent=1 // pred_region
      _
    $region29: #{gcn_forward.5} parent=1 // pred_fallthru
      _
    // Predicated region
    $region30: #{gcn_forward.5} parent=1 // pred_check
      _
    $region31: #{gcn_forward.5} parent=1 // pred_check_branch
      %370 = sbr.rel (0) target = $region33
    $region32: #{gcn_forward.5} parent=1 // pred_region
      _
    $region33: #{gcn_forward.5} parent=1 // pred_fallthru
      _
    %371 = vsyncpa [#allocation4], 1

</llo_original>
